<compile_context>
chip_gen: v6e
topology: v6e:2x2x1
jax: 0.10.0
libtpu: 0.0.40
codegen_flags: <defaults>
</compile_context>

<pallas_src>
import jax
import jax.numpy as jnp
from jax.experimental import pallas as pl
from jax.experimental.pallas import tpu as pltpu


# ----------------------------------------------------------------------------
# small helpers
# ----------------------------------------------------------------------------
def _pick_tile(n, cap, unit):
    """Largest tile <= cap that divides n and is a multiple of `unit`
    (falls back to the full dimension)."""
    if n <= cap:
        return n
    t = (cap // unit) * unit
    while t >= unit:
        if n % t == 0:
            return t
        t -= unit
    return n


def _batch_tile(B):
    # >=2 batch tiles when possible so the (parallel) batch axis of the
    # recurrent kernels can be sharded across the two TensorCores on v7x.
    if B % 16 == 0:
        return B // 2
    return B


# ----------------------------------------------------------------------------
# optional single-buffering of constant-index weight blocks (v7x VMEM saver).
# Probed once, eagerly, so the fallback path is taken if this JAX build does
# not support pipeline_mode=pl.Buffered(1).
# ----------------------------------------------------------------------------
_BUFFERED1_OK = None


def _probe_kernel(x_ref, o_ref):
    o_ref[...] = x_ref[...] + 1.0


def _buffered1_supported():
    global _BUFFERED1_OK
    if _BUFFERED1_OK is not None:
        return _BUFFERED1_OK
    try:
        spec = pl.BlockSpec((8, 128), lambda t: (0, 0),
                            pipeline_mode=pl.Buffered(1))
        out = pl.pallas_call(
            _probe_kernel,
            out_shape=jax.ShapeDtypeStruct((8, 128), jnp.float32),
            grid_spec=pltpu.PrefetchScalarGridSpec(
                num_scalar_prefetch=0,
                grid=(2,),
                in_specs=[spec],
                out_specs=pl.BlockSpec((8, 128), lambda t: (0, 0)),
            ),
            compiler_params=pltpu.CompilerParams(
                dimension_semantics=("arbitrary",)),
        )(jnp.ones((8, 128), jnp.float32))
        jax.block_until_ready(out)
        _BUFFERED1_OK = True
    except Exception:
        _BUFFERED1_OK = False
    return _BUFFERED1_OK


def _weight_spec(block_shape, index_map):
    """BlockSpec for a grid-resident (constant-index) weight block.
    Single-buffered when supported: the block never changes, so default double
    buffering only doubles its VMEM footprint (matters most on v7x, 64 MiB)."""
    if _buffered1_supported():
        return pl.BlockSpec(block_shape, index_map,
                            pipeline_mode=pl.Buffered(1))
    return pl.BlockSpec(block_shape, index_map)


# ----------------------------------------------------------------------------
# batched matmul + bias: out[M, N] = x[M, K] @ w[K, N] + b[1, N]
# (hoisted LSTM input projections and the un-fused vocab projection)
# ----------------------------------------------------------------------------
def _matmul_bias_kernel(x_ref, w_ref, b_ref, o_ref):
    o_ref[...] = (jnp.dot(x_ref[...], w_ref[...],
                          preferred_element_type=jnp.float32)
                  + b_ref[...]).astype(o_ref.dtype)


def matmul_bias(x, w, b, *, out_dtype=jnp.float32, cap_m=256, cap_n=512):
    M, K = x.shape
    K2, N = w.shape
    assert K == K2 and b.shape == (1, N)
    TM = _pick_tile(M, cap_m, 8)
    TN = _pick_tile(N, cap_n, 128)
    # TODO(synk): add a K grid axis + f32 VMEM accumulator for very large K.
    return pl.pallas_call(
        _matmul_bias_kernel,
        out_shape=jax.ShapeDtypeStruct((M, N), out_dtype),
        grid_spec=pltpu.PrefetchScalarGridSpec(
            num_scalar_prefetch=0,
            grid=(M // TM, N // TN),
            in_specs=[
                pl.BlockSpec((TM, K), lambda i, j: (i, 0)),
                pl.BlockSpec((K, TN), lambda i, j: (0, j)),
                pl.BlockSpec((1, TN), lambda i, j: (0, j)),
            ],
            out_specs=pl.BlockSpec((TM, TN), lambda i, j: (i, j)),
        ),
        compiler_params=pltpu.CompilerParams(
            dimension_semantics=("parallel", "parallel")),
    )(x, w, b)


# ----------------------------------------------------------------------------
# shared LSTM gate math (f32, PyTorch gate order i, f, g, o)
# ----------------------------------------------------------------------------
def _lstm_gates(gates, c, H):
    i = jax.nn.sigmoid(gates[:, 0 * H:1 * H])
    f = jax.nn.sigmoid(gates[:, 1 * H:2 * H])
    g = jnp.tanh(gates[:, 2 * H:3 * H])
    o = jax.nn.sigmoid(gates[:, 3 * H:4 * H])
    c_new = f * c + i * g
    h_new = o * jnp.tanh(c_new)
    return h_new, c_new


# ----------------------------------------------------------------------------
# encoder LSTM recurrence: gate pre-activations gx (= x @ W_ih + b) are
# precomputed; per step the kernel only does h @ W_hh plus the nonlinearity.
# grid = (batch tiles [parallel], time [arbitrary]); (h, c) carried in the
# resident outputs (constant time index).
# ----------------------------------------------------------------------------
def _enc_lstm_kernel(gx_ref, whh_ref, h_ref, c_ref):
    t = pl.program_id(1)

    @pl.when(t == 0)
    def _():
        h_ref[...] = jnp.zeros_like(h_ref)
        c_ref[...] = jnp.zeros_like(c_ref)

    H = whh_ref.shape[0]
    h = h_ref[...]
    gates = gx_ref[...] + jnp.dot(h.astype(whh_ref.dtype), whh_ref[...],
                                  preferred_element_type=jnp.float32)
    h_new, c_new = _lstm_gates(gates, c_ref[...], H)
    h_ref[...] = h_new
    c_ref[...] = c_new


def encoder_lstm(gx, whh):
    # gx: (S, B, 4H) time-major precomputed input-gate pre-activations
    S, B, _ = gx.shape
    H = whh.shape[0]
    TB = _batch_tile(B)
    grid_spec = pltpu.PrefetchScalarGridSpec(
        num_scalar_prefetch=0,
        grid=(B // TB, S),
        in_specs=[
            pl.BlockSpec((None, TB, 4 * H), lambda b, t: (t, b, 0)),
            _weight_spec((H, 4 * H), lambda b, t: (0, 0)),
        ],
        out_specs=(
            pl.BlockSpec((TB, H), lambda b, t: (b, 0)),
            pl.BlockSpec((TB, H), lambda b, t: (b, 0)),
        ),
    )
    return pl.pallas_call(
        _enc_lstm_kernel,
        out_shape=(jax.ShapeDtypeStruct((B, H), jnp.float32),
                   jax.ShapeDtypeStruct((B, H), jnp.float32)),
        grid_spec=grid_spec,
        compiler_params=pltpu.CompilerParams(
            dimension_semantics=("parallel", "arbitrary")),
    )(gx, whh)


# ----------------------------------------------------------------------------
# fused: context -> (mu, logsigma) -> z = eps*exp(0.5*logsigma) + mu -> z @ W_ih_z
# Produces z's per-batch contribution to the decoder gates, so the decoder
# never sees a (B, S, E+Z) concat.  One tiny kernel instead of three.
# ----------------------------------------------------------------------------
def _reparam_zgate_kernel(ctx_ref, wmu_ref, bmu_ref, wls_ref, bls_ref,
                          eps_ref, wz_ref, zg_ref):
    ctx = ctx_ref[...].astype(wmu_ref.dtype)
    mu = jnp.dot(ctx, wmu_ref[...],
                 preferred_element_type=jnp.float32) + bmu_ref[...]
    logsigma = jnp.dot(ctx, wls_ref[...],
                       preferred_element_type=jnp.float32) + bls_ref[...]
    std = jnp.exp(0.5 * logsigma)        # matches reference: std = exp(0.5*logsigma)
    z = eps_ref[...] * std + mu          # eps == 0  ->  z = mu (eval path)
    zg_ref[...] = jnp.dot(z.astype(wz_ref.dtype), wz_ref[...],
                          preferred_element_type=jnp.float32)


def reparam_zgate(context, w_mu, b_mu, w_ls, b_ls, eps, w_z):
    B = context.shape[0]
    G = w_z.shape[1]
    return pl.pallas_call(
        _reparam_zgate_kernel,
        out_shape=jax.ShapeDtypeStruct((B, G), jnp.float32),
    )(context, w_mu, b_mu, w_ls, b_ls, eps, w_z)


# ----------------------------------------------------------------------------
# decoder LSTM recurrence.  Inputs: precomputed gate pre-activations gx
# (= dropout(emb) @ W_ih_e + b) and the per-batch z contribution zg
# (= z @ W_ih_z).  Hidden states are written to a (B, S*H) buffer (batch-major
# rows) so the downstream vocab projection and the final (B, S, V) logits need
# no transpose.  Vocab projection is NOT fused here (it runs as a big parallel
# matmul afterwards).
# ----------------------------------------------------------------------------
def _dec_lstm_kernel(gx_ref, whh_ref, zg_ref, hout_ref, h_sc, c_sc):
    t = pl.program_id(1)

    @pl.when(t == 0)
    def _():
        h_sc[...] = jnp.zeros_like(h_sc)
        c_sc[...] = jnp.zeros_like(c_sc)

    H = whh_ref.shape[0]
    h = h_sc[...]
    gates = (gx_ref[...] + zg_ref[...]
             + jnp.dot(h.astype(whh_ref.dtype), whh_ref[...],
                       preferred_element_type=jnp.float32))
    h_new, c_new = _lstm_gates(gates, c_sc[...], H)
    h_sc[...] = h_new
    c_sc[...] = c_new
    hout_ref[...] = h_new.astype(hout_ref.dtype)


def decoder_lstm(gx, whh, zg):
    # gx: (S, B, 4H) time-major; returns h_all: (B, S*H) bf16
    S, B, _ = gx.shape
    H = whh.shape[0]
    assert H % 128 == 0, "decoder hidden dim must be lane-aligned (multiple of 128)"
    TB = _batch_tile(B)
    grid_spec = pltpu.PrefetchScalarGridSpec(
        num_scalar_prefetch=0,
        grid=(B // TB, S),
        in_specs=[
            pl.BlockSpec((None, TB, 4 * H), lambda b, t: (t, b, 0)),
            _weight_spec((H, 4 * H), lambda b, t: (0, 0)),
            pl.BlockSpec((TB, 4 * H), lambda b, t: (b, 0)),
        ],
        out_specs=pl.BlockSpec((TB, H), lambda b, t: (b, t)),
        scratch_shapes=[pltpu.VMEM((TB, H), jnp.float32),
                        pltpu.VMEM((TB, H), jnp.float32)],
    )
    return pl.pallas_call(
        _dec_lstm_kernel,
        out_shape=jax.ShapeDtypeStruct((B, S * H), jnp.bfloat16),
        grid_spec=grid_spec,
        compiler_params=pltpu.CompilerParams(
            dimension_semantics=("parallel", "arbitrary")),
    )(gx, whh, zg)


# ----------------------------------------------------------------------------
# RVAE module (parameter setup + glue in plain JAX, hot path in Pallas)
# ----------------------------------------------------------------------------
class RVAEPallas:
    def __init__(self, params, key):
        self.p = params
        V = params['vocab_size']
        E = params['EMB_DIM']
        HE = params['ENC_HDIM']
        HD = params['DEC_HDIM']
        Z = params['ZDIM']
        ks = jax.random.split(key, 16)

        # decide (eagerly, outside any jit trace) whether single-buffered
        # weight blocks are supported on this build.
        _buffered1_supported()

        def uni(k, shape, scale, dtype=jnp.float32):
            return jax.random.uniform(k, shape, jnp.float32,
                                      -scale, scale).astype(dtype)

        bf16 = jnp.bfloat16

        # nn.Embedding default init ~ N(0, 1); gather stays f32, activations
        # are cast to bf16 right before the MXU matmuls.
        self.wemb = jax.random.normal(ks[0], (V, E), jnp.float32)

        # encoder LSTM (PyTorch stores (4H, in); pre-transposed; gates i,f,g,o)
        se = 1.0 / float(HE) ** 0.5
        self.enc_wih = uni(ks[1], (E, 4 * HE), se, bf16)
        self.enc_whh = uni(ks[2], (HE, 4 * HE), se, bf16)
        self.enc_b = uni(ks[3], (1, 4 * HE), se) + uni(ks[4], (1, 4 * HE), se)

        # context -> mu / logsigma linears
        sl = 1.0 / float(2 * HE) ** 0.5
        self.w_mu = uni(ks[5], (2 * HE, Z), sl, bf16)
        self.b_mu = uni(ks[6], (1, Z), sl)
        self.w_ls = uni(ks[7], (2 * HE, Z), sl, bf16)
        self.b_ls = uni(ks[8], (1, Z), sl)

        # decoder LSTM: W_ih split into embedding part and z part so z can be
        # folded into a per-batch gate bias once per sequence.
        sd = 1.0 / float(HD) ** 0.5
        dec_wih = uni(ks[9], (E + Z, 4 * HD), sd, bf16)
        self.dec_wih_e = dec_wih[:E]
        self.dec_wih_z = dec_wih[E:]
        self.dec_whh = uni(ks[10], (HD, 4 * HD), sd, bf16)
        self.dec_b = uni(ks[11], (1, 4 * HD), sd) + uni(ks[12], (1, 4 * HD), sd)

        # fc_o: DEC_HDIM -> vocab
        so = 1.0 / float(HD) ** 0.5
        self.w_o = uni(ks[13], (HD, V), so, bf16)
        self.b_o = uni(ks[14], (1, V), so)

    def __call__(self, enc_input, dec_input, *, eps_key, dropout_key,
                 training=True):
        p = self.p
        B, S_enc = enc_input.shape
        _, S_dec = dec_input.shape
        E, HE, HD, Z, V = (p['EMB_DIM'], p['ENC_HDIM'], p['DEC_HDIM'],
                           p['ZDIM'], p['vocab_size'])

        # ---- encode ----
        # TODO(synk): embedding gather (data-dependent HBM gather) kept in plain
        # JAX; indices are transposed (tiny int matrix) so embeddings come out
        # time-major with no (B, S, E) transpose pass over HBM.
        x_enc = self.wemb[enc_input.T].astype(jnp.bfloat16)         # (S, B, E)
        gx_enc = matmul_bias(x_enc.reshape(S_enc * B, E),           # hoisted x@W_ih
                             self.enc_wih, self.enc_b)              # (S*B, 4HE) f32
        hN, cN = encoder_lstm(gx_enc.reshape(S_enc, B, 4 * HE), self.enc_whh)
        context = jnp.concatenate([hN, cN], axis=-1)                # (B, 2*HE)

        # ---- reparameterize + fold z into the decoder gate bias ----
        if training:
            eps = jax.random.normal(eps_key, (B, Z), jnp.float32)
        else:
            eps = jnp.zeros((B, Z), jnp.float32)                    # z = mu
        zgate = reparam_zgate(context, self.w_mu, self.b_mu,
                              self.w_ls, self.b_ls, eps,
                              self.dec_wih_z)                       # (B, 4HD) f32

        # ---- decode ----
        x_dec = self.wemb[dec_input.T]                              # (S, B, E) f32
        # F.dropout(x, p) in the reference defaults to training=True (always on)
        keep = 1.0 - p['DROP_PROB']
        mask = jax.random.bernoulli(dropout_key, keep, x_dec.shape)
        x_dec = (x_dec * mask.astype(jnp.float32) * (1.0 / keep)).astype(jnp.bfloat16)
        gx_dec = matmul_bias(x_dec.reshape(S_dec * B, E),           # hoisted x@W_ih_e
                             self.dec_wih_e, self.dec_b)            # (S*B, 4HD) f32
        h_all = decoder_lstm(gx_dec.reshape(S_dec, B, 4 * HD),
                             self.dec_whh, zgate)                   # (B, S*HD) bf16

        # ---- vocab projection (un-fused from the time loop; V-tiled, parallel) ----
        logits = matmul_bias(h_all.reshape(B * S_dec, HD), self.w_o, self.b_o)
        return logits.reshape(B, S_dec, V)                          # (B, S, V), no transpose


if __name__ == "__main__":
    # small, lane-aligned shapes (E/H multiples of 128, V multiple of 128,
    # B multiple of 8) consistent with the module's forward.
    P = {'BATCH_SIZE': 8, 'MAX_SEQ_LEN': 8, 'vocab_size': 256, 'EMB_DIM': 128,
         'ENC_HDIM': 128, 'DEC_HDIM': 128, 'ZDIM': 32, 'DROP_PROB': 0.4}

    root = jax.random.PRNGKey(0)
    k_param, k_enc, k_dec, k_eps, k_drop = jax.random.split(root, 5)

    model = RVAEPallas(P, k_param)

    enc_input = jax.random.randint(
        k_enc, (P['BATCH_SIZE'], P['MAX_SEQ_LEN']), 0, P['vocab_size'])
    dec_input = jax.random.randint(
        k_dec, (P['BATCH_SIZE'], P['MAX_SEQ_LEN']), 0, P['vocab_size'])

    @jax.jit
    def fwd(ei, di, ek, dk):
        return model(ei, di, eps_key=ek, dropout_key=dk, training=True)

    logits = jax.block_until_ready(fwd(enc_input, dec_input, k_eps, k_drop))

    assert logits.shape == (P['BATCH_SIZE'], P['MAX_SEQ_LEN'], P['vocab_size'])
    assert bool(jnp.all(jnp.isfinite(logits)))
    print("KERNEL_OK")
</pallas_src>

<mosaic_0001>
module attributes {stable_mosaic.version = 11 : i64} {
  func.func @_probe_kernel(%arg0: i32, %arg1: memref<8x128xf32, #tpu.memory_space<vmem>>, %arg2: memref<8x128xf32, #tpu.memory_space<vmem>>) attributes {dimension_semantics = [#tpu.dimension_semantics<arbitrary>], iteration_bounds = array<i64: 2>, scalar_prefetch = 0 : i64, scratch_operands = 0 : i64, tpu.core_type = #tpu.core_type<tc>, window_params = [{pipeline_mode = #tpu.pipeline_mode<synchronous>, transform_indices = @transform_0, window_bounds = array<i64: 8, 128>}, {pipeline_mode = #tpu.pipeline_mode<synchronous>, transform_indices = @transform_1, window_bounds = array<i64: 8, 128>}]} {
    %c0 = arith.constant 0 : index
    %c0_0 = arith.constant 0 : index
    %0 = vector.load %arg1[%c0, %c0_0] : memref<8x128xf32, #tpu.memory_space<vmem>>, vector<8x128xf32>
    %cst = arith.constant 1.000000e+00 : f32
    %1 = vector.broadcast %cst : f32 to vector<8x128xf32>
    %2 = arith.addf %0, %1 : vector<8x128xf32>
    %c0_1 = arith.constant 0 : index
    %c0_2 = arith.constant 0 : index
    %3 = vector.load %arg2[%c0_1, %c0_2] : memref<8x128xf32, #tpu.memory_space<vmem>>, vector<8x128xf32>
    tpu.vector_store %arg2[%c0_1, %c0_2], %2 {strides = array<i32>} : memref<8x128xf32, #tpu.memory_space<vmem>>, vector<8x128xf32>,
    return
  }
  func.func @transform_0(%arg0: i32) -> (i32, i32) {
    %c0_i32 = arith.constant 0 : i32
    %c0_i32_0 = arith.constant 0 : i32
    %c0_i32_1 = arith.constant 0 : i32
    return %c0_i32, %c0_i32_0 : i32, i32
  }
  func.func @transform_1(%arg0: i32) -> (i32, i32) {
    %c0_i32 = arith.constant 0 : i32
    %c0_i32_0 = arith.constant 0 : i32
    %c0_i32_1 = arith.constant 0 : i32
    return %c0_i32, %c0_i32_0 : i32, i32
  }
}

module attributes {stable_mosaic.version = 11 : i64} {
  func.func @_matmul_bias_kernel(%arg0: i32, %arg1: i32, %arg2: memref<64x128xbf16, #tpu.memory_space<vmem>>, %arg3: memref<128x512xbf16, #tpu.memory_space<vmem>>, %arg4: memref<1x512xf32, #tpu.memory_space<vmem>>, %arg5: memref<64x512xf32, #tpu.memory_space<vmem>>) attributes {dimension_semantics = [#tpu.dimension_semantics<parallel>, #tpu.dimension_semantics<parallel>], iteration_bounds = array<i64: 1, 1>, scalar_prefetch = 0 : i64, scratch_operands = 0 : i64, tpu.core_type = #tpu.core_type<tc>, window_params = [{transform_indices = @transform_0, window_bounds = array<i64: 64, 128>}, {transform_indices = @transform_1, window_bounds = array<i64: 128, 512>}, {transform_indices = @transform_2, window_bounds = array<i64: 1, 512>}, {transform_indices = @transform_3, window_bounds = array<i64: 64, 512>}]} {
    %c0 = arith.constant 0 : index
    %c0_0 = arith.constant 0 : index
    %0 = vector.load %arg2[%c0, %c0_0] : memref<64x128xbf16, #tpu.memory_space<vmem>>, vector<64x128xbf16>
    %c0_1 = arith.constant 0 : index
    %c0_2 = arith.constant 0 : index
    %1 = vector.load %arg3[%c0_1, %c0_2] : memref<128x512xbf16, #tpu.memory_space<vmem>>, vector<128x512xbf16>
    %cst = arith.constant dense<0.000000e+00> : vector<64x512xf32>
    %2 = tpu.matmul %0, %1, %cst {dimension_numbers = #tpu.dot_dimension_numbers<[1], [0], [0], [1], [0, 0, 1, 1], [], []>} : vector<64x128xbf16>, vector<128x512xbf16>, vector<64x512xf32> -> vector<64x512xf32>
    %c0_3 = arith.constant 0 : index
    %c0_4 = arith.constant 0 : index
    %3 = vector.load %arg4[%c0_3, %c0_4] : memref<1x512xf32, #tpu.memory_space<vmem>>, vector<1x512xf32>
    %4 = vector.broadcast %3 : vector<1x512xf32> to vector<64x512xf32>
    %5 = arith.addf %2, %4 : vector<64x512xf32>
    %c0_5 = arith.constant 0 : index
    %c0_6 = arith.constant 0 : index
    %6 = vector.load %arg5[%c0_5, %c0_6] : memref<64x512xf32, #tpu.memory_space<vmem>>, vector<64x512xf32>
    tpu.vector_store %arg5[%c0_5, %c0_6], %5 {strides = array<i32>} : memref<64x512xf32, #tpu.memory_space<vmem>>, vector<64x512xf32>,
    return
  }
  func.func @transform_0(%arg0: i32, %arg1: i32) -> (i32, i32) {
    %c0_i32 = arith.constant 0 : i32
    %c0_i32_0 = arith.constant 0 : i32
    return %arg0, %c0_i32 : i32, i32
  }
  func.func @transform_1(%arg0: i32, %arg1: i32) -> (i32, i32) {
    %c0_i32 = arith.constant 0 : i32
    %c0_i32_0 = arith.constant 0 : i32
    return %c0_i32, %arg1 : i32, i32
  }
  func.func @transform_2(%arg0: i32, %arg1: i32) -> (i32, i32) {
    %c0_i32 = arith.constant 0 : i32
    %c0_i32_0 = arith.constant 0 : i32
    return %c0_i32, %arg1 : i32, i32
  }
  func.func @transform_3(%arg0: i32, %arg1: i32) -> (i32, i32) {
    %c0_i32 = arith.constant 0 : i32
    return %arg0, %arg1 : i32, i32
  }
}

module attributes {stable_mosaic.version = 11 : i64} {
  func.func @_enc_lstm_kernel(%arg0: i32, %arg1: i32, %arg2: memref<1x8x512xf32, #tpu.memory_space<vmem>>, %arg3: memref<128x512xbf16, #tpu.memory_space<vmem>>, %arg4: memref<8x128xf32, #tpu.memory_space<vmem>>, %arg5: memref<8x128xf32, #tpu.memory_space<vmem>>) attributes {dimension_semantics = [#tpu.dimension_semantics<parallel>, #tpu.dimension_semantics<arbitrary>], iteration_bounds = array<i64: 1, 8>, scalar_prefetch = 0 : i64, scratch_operands = 0 : i64, tpu.core_type = #tpu.core_type<tc>, window_params = [{transform_indices = @transform_0, window_bounds = array<i64: 1, 8, 512>}, {pipeline_mode = #tpu.pipeline_mode<synchronous>, transform_indices = @transform_1, window_bounds = array<i64: 128, 512>}, {transform_indices = @transform_2, window_bounds = array<i64: 8, 128>}, {transform_indices = @transform_3, window_bounds = array<i64: 8, 128>}]} {
    %c0_i32 = arith.constant 0 : i32
    %0 = arith.cmpi eq, %arg1, %c0_i32 : i32
    %1 = arith.extui %0 : i1 to i32
    %c0_i32_0 = arith.constant 0 : i32
    %2 = arith.cmpi ne, %1, %c0_i32_0 : i32
    scf.if %2 {
      %cst_16 = arith.constant 0.000000e+00 : f32
      %38 = vector.broadcast %cst_16 : f32 to vector<8x128xf32>
      %c0_17 = arith.constant 0 : index
      %c0_18 = arith.constant 0 : index
      %39 = vector.load %arg4[%c0_17, %c0_18] : memref<8x128xf32, #tpu.memory_space<vmem>>, vector<8x128xf32>
      tpu.vector_store %arg4[%c0_17, %c0_18], %38 {strides = array<i32>} : memref<8x128xf32, #tpu.memory_space<vmem>>, vector<8x128xf32>,
      %cst_19 = arith.constant 0.000000e+00 : f32
      %40 = vector.broadcast %cst_19 : f32 to vector<8x128xf32>
      %c0_20 = arith.constant 0 : index
      %c0_21 = arith.constant 0 : index
      %41 = vector.load %arg5[%c0_20, %c0_21] : memref<8x128xf32, #tpu.memory_space<vmem>>, vector<8x128xf32>
      tpu.vector_store %arg5[%c0_20, %c0_21], %40 {strides = array<i32>} : memref<8x128xf32, #tpu.memory_space<vmem>>, vector<8x128xf32>,
    } else {
    }
    %c0 = arith.constant 0 : index
    %c0_1 = arith.constant 0 : index
    %3 = vector.load %arg4[%c0, %c0_1] : memref<8x128xf32, #tpu.memory_space<vmem>>, vector<8x128xf32>
    %c0_2 = arith.constant 0 : index
    %c0_3 = arith.constant 0 : index
    %c0_4 = arith.constant 0 : index
    %4 = vector.load %arg2[%c0_2, %c0_3, %c0_4] : memref<1x8x512xf32, #tpu.memory_space<vmem>>, vector<1x8x512xf32>
    %5 = vector.shape_cast %4 : vector<1x8x512xf32> to vector<8x512xf32>
    %6 = arith.truncf %3 : vector<8x128xf32> to vector<8x128xbf16>
    %c0_5 = arith.constant 0 : index
    %c0_6 = arith.constant 0 : index
    %7 = vector.load %arg3[%c0_5, %c0_6] : memref<128x512xbf16, #tpu.memory_space<vmem>>, vector<128x512xbf16>
    %cst = arith.constant dense<0.000000e+00> : vector<8x512xf32>
    %8 = tpu.matmul %6, %7, %cst {dimension_numbers = #tpu.dot_dimension_numbers<[1], [0], [0], [1], [0, 0, 1, 1], [], []>} : vector<8x128xbf16>, vector<128x512xbf16>, vector<8x512xf32> -> vector<8x512xf32>
    %9 = arith.addf %5, %8 : vector<8x512xf32>
    %c0_7 = arith.constant 0 : index
    %c0_8 = arith.constant 0 : index
    %10 = vector.load %arg5[%c0_7, %c0_8] : memref<8x128xf32, #tpu.memory_space<vmem>>, vector<8x128xf32>
    %11 = vector.extract_strided_slice %9 {offsets = [0, 0], sizes = [8, 128], strides = [1, 1]} : vector<8x512xf32> to vector<8x128xf32>
    %12 = arith.negf %11 : vector<8x128xf32>
    %13 = math.exp %12 : vector<8x128xf32>
    %cst_9 = arith.constant 1.000000e+00 : f32
    %14 = vector.broadcast %cst_9 : f32 to vector<8x128xf32>
    %15 = arith.addf %14, %13 : vector<8x128xf32>
    %16 = arith.divf %14, %15 : vector<8x128xf32>
    %17 = vector.extract_strided_slice %9 {offsets = [0, 128], sizes = [8, 128], strides = [1, 1]} : vector<8x512xf32> to vector<8x128xf32>
    %18 = arith.negf %17 : vector<8x128xf32>
    %19 = math.exp %18 : vector<8x128xf32>
    %cst_10 = arith.constant 1.000000e+00 : f32
    %20 = vector.broadcast %cst_10 : f32 to vector<8x128xf32>
    %21 = arith.addf %20, %19 : vector<8x128xf32>
    %22 = arith.divf %20, %21 : vector<8x128xf32>
    %23 = vector.extract_strided_slice %9 {offsets = [0, 256], sizes = [8, 128], strides = [1, 1]} : vector<8x512xf32> to vector<8x128xf32>
    %24 = math.tanh %23 : vector<8x128xf32>
    %25 = vector.extract_strided_slice %9 {offsets = [0, 384], sizes = [8, 128], strides = [1, 1]} : vector<8x512xf32> to vector<8x128xf32>
    %26 = arith.negf %25 : vector<8x128xf32>
    %27 = math.exp %26 : vector<8x128xf32>
    %cst_11 = arith.constant 1.000000e+00 : f32
    %28 = vector.broadcast %cst_11 : f32 to vector<8x128xf32>
    %29 = arith.addf %28, %27 : vector<8x128xf32>
    %30 = arith.divf %28, %29 : vector<8x128xf32>
    %31 = arith.mulf %22, %10 : vector<8x128xf32>
    %32 = arith.mulf %16, %24 : vector<8x128xf32>
    %33 = arith.addf %31, %32 : vector<8x128xf32>
    %34 = math.tanh %33 : vector<8x128xf32>
    %35 = arith.mulf %30, %34 : vector<8x128xf32>
    %c0_12 = arith.constant 0 : index
    %c0_13 = arith.constant 0 : index
    %36 = vector.load %arg4[%c0_12, %c0_13] : memref<8x128xf32, #tpu.memory_space<vmem>>, vector<8x128xf32>
    tpu.vector_store %arg4[%c0_12, %c0_13], %35 {strides = array<i32>} : memref<8x128xf32, #tpu.memory_space<vmem>>, vector<8x128xf32>,
    %c0_14 = arith.constant 0 : index
    %c0_15 = arith.constant 0 : index
    %37 = vector.load %arg5[%c0_14, %c0_15] : memref<8x128xf32, #tpu.memory_space<vmem>>, vector<8x128xf32>
    tpu.vector_store %arg5[%c0_14, %c0_15], %33 {strides = array<i32>} : memref<8x128xf32, #tpu.memory_space<vmem>>, vector<8x128xf32>,
    return
  }
  func.func @transform_0(%arg0: i32, %arg1: i32) -> (i32, i32, i32) {
    %c0_i32 = arith.constant 0 : i32
    %c0_i32_0 = arith.constant 0 : i32
    return %arg1, %arg0, %c0_i32 : i32, i32, i32
  }
  func.func @transform_1(%arg0: i32, %arg1: i32) -> (i32, i32) {
    %c0_i32 = arith.constant 0 : i32
    %c0_i32_0 = arith.constant 0 : i32
    %c0_i32_1 = arith.constant 0 : i32
    return %c0_i32, %c0_i32_0 : i32, i32
  }
  func.func @transform_2(%arg0: i32, %arg1: i32) -> (i32, i32) {
    %c0_i32 = arith.constant 0 : i32
    %c0_i32_0 = arith.constant 0 : i32
    return %arg0, %c0_i32 : i32, i32
  }
  func.func @transform_3(%arg0: i32, %arg1: i32) -> (i32, i32) {
    %c0_i32 = arith.constant 0 : i32
    %c0_i32_0 = arith.constant 0 : i32
    return %arg0, %c0_i32 : i32, i32
  }
}

module attributes {stable_mosaic.version = 11 : i64} {
  func.func @_reparam_zgate_kernel(%arg0: memref<8x256xf32, #tpu.memory_space<vmem>>, %arg1: memref<256x32xbf16, #tpu.memory_space<vmem>>, %arg2: memref<1x32xf32, #tpu.memory_space<vmem>>, %arg3: memref<256x32xbf16, #tpu.memory_space<vmem>>, %arg4: memref<1x32xf32, #tpu.memory_space<vmem>>, %arg5: memref<8x32xf32, #tpu.memory_space<vmem>>, %arg6: memref<32x512xbf16, #tpu.memory_space<vmem>>, %arg7: memref<8x512xf32, #tpu.memory_space<vmem>>) attributes {dimension_semantics = [], scalar_prefetch = 0 : i64, scratch_operands = 0 : i64, tpu.core_type = #tpu.core_type<tc>} {
    %c0 = arith.constant 0 : index
    %c0_0 = arith.constant 0 : index
    %0 = vector.load %arg0[%c0, %c0_0] : memref<8x256xf32, #tpu.memory_space<vmem>>, vector<8x256xf32>
    %1 = arith.truncf %0 : vector<8x256xf32> to vector<8x256xbf16>
    %c0_1 = arith.constant 0 : index
    %c0_2 = arith.constant 0 : index
    %2 = vector.load %arg1[%c0_1, %c0_2] : memref<256x32xbf16, #tpu.memory_space<vmem>>, vector<256x32xbf16>
    %cst = arith.constant dense<0.000000e+00> : vector<8x32xf32>
    %3 = tpu.matmul %1, %2, %cst {dimension_numbers = #tpu.dot_dimension_numbers<[1], [0], [0], [1], [0, 0, 1, 1], [], []>} : vector<8x256xbf16>, vector<256x32xbf16>, vector<8x32xf32> -> vector<8x32xf32>
    %c0_3 = arith.constant 0 : index
    %c0_4 = arith.constant 0 : index
    %4 = vector.load %arg2[%c0_3, %c0_4] : memref<1x32xf32, #tpu.memory_space<vmem>>, vector<1x32xf32>
    %5 = vector.broadcast %4 : vector<1x32xf32> to vector<8x32xf32>
    %6 = arith.addf %3, %5 : vector<8x32xf32>
    %c0_5 = arith.constant 0 : index
    %c0_6 = arith.constant 0 : index
    %7 = vector.load %arg3[%c0_5, %c0_6] : memref<256x32xbf16, #tpu.memory_space<vmem>>, vector<256x32xbf16>
    %cst_7 = arith.constant dense<0.000000e+00> : vector<8x32xf32>
    %8 = tpu.matmul %1, %7, %cst_7 {dimension_numbers = #tpu.dot_dimension_numbers<[1], [0], [0], [1], [0, 0, 1, 1], [], []>} : vector<8x256xbf16>, vector<256x32xbf16>, vector<8x32xf32> -> vector<8x32xf32>
    %c0_8 = arith.constant 0 : index
    %c0_9 = arith.constant 0 : index
    %9 = vector.load %arg4[%c0_8, %c0_9] : memref<1x32xf32, #tpu.memory_space<vmem>>, vector<1x32xf32>
    %10 = vector.broadcast %9 : vector<1x32xf32> to vector<8x32xf32>
    %11 = arith.addf %8, %10 : vector<8x32xf32>
    %cst_10 = arith.constant 5.000000e-01 : f32
    %12 = vector.broadcast %cst_10 : f32 to vector<8x32xf32>
    %13 = arith.mulf %12, %11 : vector<8x32xf32>
    %14 = math.exp %13 : vector<8x32xf32>
    %c0_11 = arith.constant 0 : index
    %c0_12 = arith.constant 0 : index
    %15 = vector.load %arg5[%c0_11, %c0_12] : memref<8x32xf32, #tpu.memory_space<vmem>>, vector<8x32xf32>
    %16 = arith.mulf %15, %14 : vector<8x32xf32>
    %17 = arith.addf %16, %6 : vector<8x32xf32>
    %18 = arith.truncf %17 : vector<8x32xf32> to vector<8x32xbf16>
    %c0_13 = arith.constant 0 : index
    %c0_14 = arith.constant 0 : index
    %19 = vector.load %arg6[%c0_13, %c0_14] : memref<32x512xbf16, #tpu.memory_space<vmem>>, vector<32x512xbf16>
    %cst_15 = arith.constant dense<0.000000e+00> : vector<8x512xf32>
    %20 = tpu.matmul %18, %19, %cst_15 {dimension_numbers = #tpu.dot_dimension_numbers<[1], [0], [0], [1], [0, 0, 1, 1], [], []>} : vector<8x32xbf16>, vector<32x512xbf16>, vector<8x512xf32> -> vector<8x512xf32>
    %c0_16 = arith.constant 0 : index
    %c0_17 = arith.constant 0 : index
    %21 = vector.load %arg7[%c0_16, %c0_17] : memref<8x512xf32, #tpu.memory_space<vmem>>, vector<8x512xf32>
    tpu.vector_store %arg7[%c0_16, %c0_17], %20 {strides = array<i32>} : memref<8x512xf32, #tpu.memory_space<vmem>>, vector<8x512xf32>,
    return
  }
}

module attributes {stable_mosaic.version = 11 : i64} {
  func.func @_dec_lstm_kernel(%arg0: i32, %arg1: i32, %arg2: memref<1x8x512xf32, #tpu.memory_space<vmem>>, %arg3: memref<128x512xbf16, #tpu.memory_space<vmem>>, %arg4: memref<8x512xf32, #tpu.memory_space<vmem>>, %arg5: memref<8x128xbf16, #tpu.memory_space<vmem>>, %arg6: memref<8x128xf32, #tpu.memory_space<vmem>>, %arg7: memref<8x128xf32, #tpu.memory_space<vmem>>) attributes {dimension_semantics = [#tpu.dimension_semantics<parallel>, #tpu.dimension_semantics<arbitrary>], iteration_bounds = array<i64: 1, 8>, scalar_prefetch = 0 : i64, scratch_operands = 2 : i64, tpu.core_type = #tpu.core_type<tc>, window_params = [{transform_indices = @transform_0, window_bounds = array<i64: 1, 8, 512>}, {pipeline_mode = #tpu.pipeline_mode<synchronous>, transform_indices = @transform_1, window_bounds = array<i64: 128, 512>}, {transform_indices = @transform_2, window_bounds = array<i64: 8, 512>}, {transform_indices = @transform_3, window_bounds = array<i64: 8, 128>}]} {
    %c0_i32 = arith.constant 0 : i32
    %0 = arith.cmpi eq, %arg1, %c0_i32 : i32
    %1 = arith.extui %0 : i1 to i32
    %c0_i32_0 = arith.constant 0 : i32
    %2 = arith.cmpi ne, %1, %c0_i32_0 : i32
    scf.if %2 {
      %cst_20 = arith.constant 0.000000e+00 : f32
      %42 = vector.broadcast %cst_20 : f32 to vector<8x128xf32>
      %c0_21 = arith.constant 0 : index
      %c0_22 = arith.constant 0 : index
      %43 = vector.load %arg6[%c0_21, %c0_22] : memref<8x128xf32, #tpu.memory_space<vmem>>, vector<8x128xf32>
      tpu.vector_store %arg6[%c0_21, %c0_22], %42 {strides = array<i32>} : memref<8x128xf32, #tpu.memory_space<vmem>>, vector<8x128xf32>,
      %cst_23 = arith.constant 0.000000e+00 : f32
      %44 = vector.broadcast %cst_23 : f32 to vector<8x128xf32>
      %c0_24 = arith.constant 0 : index
      %c0_25 = arith.constant 0 : index
      %45 = vector.load %arg7[%c0_24, %c0_25] : memref<8x128xf32, #tpu.memory_space<vmem>>, vector<8x128xf32>
      tpu.vector_store %arg7[%c0_24, %c0_25], %44 {strides = array<i32>} : memref<8x128xf32, #tpu.memory_space<vmem>>, vector<8x128xf32>,
    } else {
    }
    %c0 = arith.constant 0 : index
    %c0_1 = arith.constant 0 : index
    %3 = vector.load %arg6[%c0, %c0_1] : memref<8x128xf32, #tpu.memory_space<vmem>>, vector<8x128xf32>
    %c0_2 = arith.constant 0 : index
    %c0_3 = arith.constant 0 : index
    %c0_4 = arith.constant 0 : index
    %4 = vector.load %arg2[%c0_2, %c0_3, %c0_4] : memref<1x8x512xf32, #tpu.memory_space<vmem>>, vector<1x8x512xf32>
    %5 = vector.shape_cast %4 : vector<1x8x512xf32> to vector<8x512xf32>
    %c0_5 = arith.constant 0 : index
    %c0_6 = arith.constant 0 : index
    %6 = vector.load %arg4[%c0_5, %c0_6] : memref<8x512xf32, #tpu.memory_space<vmem>>, vector<8x512xf32>
    %7 = arith.addf %5, %6 : vector<8x512xf32>
    %8 = arith.truncf %3 : vector<8x128xf32> to vector<8x128xbf16>
    %c0_7 = arith.constant 0 : index
    %c0_8 = arith.constant 0 : index
    %9 = vector.load %arg3[%c0_7, %c0_8] : memref<128x512xbf16, #tpu.memory_space<vmem>>, vector<128x512xbf16>
    %cst = arith.constant dense<0.000000e+00> : vector<8x512xf32>
    %10 = tpu.matmul %8, %9, %cst {dimension_numbers = #tpu.dot_dimension_numbers<[1], [0], [0], [1], [0, 0, 1, 1], [], []>} : vector<8x128xbf16>, vector<128x512xbf16>, vector<8x512xf32> -> vector<8x512xf32>
    %11 = arith.addf %7, %10 : vector<8x512xf32>
    %c0_9 = arith.constant 0 : index
    %c0_10 = arith.constant 0 : index
    %12 = vector.load %arg7[%c0_9, %c0_10] : memref<8x128xf32, #tpu.memory_space<vmem>>, vector<8x128xf32>
    %13 = vector.extract_strided_slice %11 {offsets = [0, 0], sizes = [8, 128], strides = [1, 1]} : vector<8x512xf32> to vector<8x128xf32>
    %14 = arith.negf %13 : vector<8x128xf32>
    %15 = math.exp %14 : vector<8x128xf32>
    %cst_11 = arith.constant 1.000000e+00 : f32
    %16 = vector.broadcast %cst_11 : f32 to vector<8x128xf32>
    %17 = arith.addf %16, %15 : vector<8x128xf32>
    %18 = arith.divf %16, %17 : vector<8x128xf32>
    %19 = vector.extract_strided_slice %11 {offsets = [0, 128], sizes = [8, 128], strides = [1, 1]} : vector<8x512xf32> to vector<8x128xf32>
    %20 = arith.negf %19 : vector<8x128xf32>
    %21 = math.exp %20 : vector<8x128xf32>
    %cst_12 = arith.constant 1.000000e+00 : f32
    %22 = vector.broadcast %cst_12 : f32 to vector<8x128xf32>
    %23 = arith.addf %22, %21 : vector<8x128xf32>
    %24 = arith.divf %22, %23 : vector<8x128xf32>
    %25 = vector.extract_strided_slice %11 {offsets = [0, 256], sizes = [8, 128], strides = [1, 1]} : vector<8x512xf32> to vector<8x128xf32>
    %26 = math.tanh %25 : vector<8x128xf32>
    %27 = vector.extract_strided_slice %11 {offsets = [0, 384], sizes = [8, 128], strides = [1, 1]} : vector<8x512xf32> to vector<8x128xf32>
    %28 = arith.negf %27 : vector<8x128xf32>
    %29 = math.exp %28 : vector<8x128xf32>
    %cst_13 = arith.constant 1.000000e+00 : f32
    %30 = vector.broadcast %cst_13 : f32 to vector<8x128xf32>
    %31 = arith.addf %30, %29 : vector<8x128xf32>
    %32 = arith.divf %30, %31 : vector<8x128xf32>
    %33 = arith.mulf %24, %12 : vector<8x128xf32>
    %34 = arith.mulf %18, %26 : vector<8x128xf32>
    %35 = arith.addf %33, %34 : vector<8x128xf32>
    %36 = math.tanh %35 : vector<8x128xf32>
    %37 = arith.mulf %32, %36 : vector<8x128xf32>
    %c0_14 = arith.constant 0 : index
    %c0_15 = arith.constant 0 : index
    %38 = vector.load %arg6[%c0_14, %c0_15] : memref<8x128xf32, #tpu.memory_space<vmem>>, vector<8x128xf32>
    tpu.vector_store %arg6[%c0_14, %c0_15], %37 {strides = array<i32>} : memref<8x128xf32, #tpu.memory_space<vmem>>, vector<8x128xf32>,
    %c0_16 = arith.constant 0 : index
    %c0_17 = arith.constant 0 : index
    %39 = vector.load %arg7[%c0_16, %c0_17] : memref<8x128xf32, #tpu.memory_space<vmem>>, vector<8x128xf32>
    tpu.vector_store %arg7[%c0_16, %c0_17], %35 {strides = array<i32>} : memref<8x128xf32, #tpu.memory_space<vmem>>, vector<8x128xf32>,
    %40 = arith.truncf %37 : vector<8x128xf32> to vector<8x128xbf16>
    %c0_18 = arith.constant 0 : index
    %c0_19 = arith.constant 0 : index
    %41 = vector.load %arg5[%c0_18, %c0_19] : memref<8x128xbf16, #tpu.memory_space<vmem>>, vector<8x128xbf16>
    tpu.vector_store %arg5[%c0_18, %c0_19], %40 {strides = array<i32>} : memref<8x128xbf16, #tpu.memory_space<vmem>>, vector<8x128xbf16>,
    return
  }
  func.func @transform_0(%arg0: i32, %arg1: i32) -> (i32, i32, i32) {
    %c0_i32 = arith.constant 0 : i32
    %c0_i32_0 = arith.constant 0 : i32
    return %arg1, %arg0, %c0_i32 : i32, i32, i32
  }
  func.func @transform_1(%arg0: i32, %arg1: i32) -> (i32, i32) {
    %c0_i32 = arith.constant 0 : i32
    %c0_i32_0 = arith.constant 0 : i32
    %c0_i32_1 = arith.constant 0 : i32
    return %c0_i32, %c0_i32_0 : i32, i32
  }
  func.func @transform_2(%arg0: i32, %arg1: i32) -> (i32, i32) {
    %c0_i32 = arith.constant 0 : i32
    %c0_i32_0 = arith.constant 0 : i32
    return %arg0, %c0_i32 : i32, i32
  }
  func.func @transform_3(%arg0: i32, %arg1: i32) -> (i32, i32) {
    %c0_i32 = arith.constant 0 : i32
    return %arg0, %arg1 : i32, i32
  }
}

module attributes {stable_mosaic.version = 11 : i64} {
  func.func @_matmul_bias_kernel(%arg0: i32, %arg1: i32, %arg2: memref<64x128xbf16, #tpu.memory_space<vmem>>, %arg3: memref<128x256xbf16, #tpu.memory_space<vmem>>, %arg4: memref<1x256xf32, #tpu.memory_space<vmem>>, %arg5: memref<64x256xf32, #tpu.memory_space<vmem>>) attributes {dimension_semantics = [#tpu.dimension_semantics<parallel>, #tpu.dimension_semantics<parallel>], iteration_bounds = array<i64: 1, 1>, scalar_prefetch = 0 : i64, scratch_operands = 0 : i64, tpu.core_type = #tpu.core_type<tc>, window_params = [{transform_indices = @transform_0, window_bounds = array<i64: 64, 128>}, {transform_indices = @transform_1, window_bounds = array<i64: 128, 256>}, {transform_indices = @transform_2, window_bounds = array<i64: 1, 256>}, {transform_indices = @transform_3, window_bounds = array<i64: 64, 256>}]} {
    %c0 = arith.constant 0 : index
    %c0_0 = arith.constant 0 : index
    %0 = vector.load %arg2[%c0, %c0_0] : memref<64x128xbf16, #tpu.memory_space<vmem>>, vector<64x128xbf16>
    %c0_1 = arith.constant 0 : index
    %c0_2 = arith.constant 0 : index
    %1 = vector.load %arg3[%c0_1, %c0_2] : memref<128x256xbf16, #tpu.memory_space<vmem>>, vector<128x256xbf16>
    %cst = arith.constant dense<0.000000e+00> : vector<64x256xf32>
    %2 = tpu.matmul %0, %1, %cst {dimension_numbers = #tpu.dot_dimension_numbers<[1], [0], [0], [1], [0, 0, 1, 1], [], []>} : vector<64x128xbf16>, vector<128x256xbf16>, vector<64x256xf32> -> vector<64x256xf32>
    %c0_3 = arith.constant 0 : index
    %c0_4 = arith.constant 0 : index
    %3 = vector.load %arg4[%c0_3, %c0_4] : memref<1x256xf32, #tpu.memory_space<vmem>>, vector<1x256xf32>
    %4 = vector.broadcast %3 : vector<1x256xf32> to vector<64x256xf32>
    %5 = arith.addf %2, %4 : vector<64x256xf32>
    %c0_5 = arith.constant 0 : index
    %c0_6 = arith.constant 0 : index
    %6 = vector.load %arg5[%c0_5, %c0_6] : memref<64x256xf32, #tpu.memory_space<vmem>>, vector<64x256xf32>
    tpu.vector_store %arg5[%c0_5, %c0_6], %5 {strides = array<i32>} : memref<64x256xf32, #tpu.memory_space<vmem>>, vector<64x256xf32>,
    return
  }
  func.func @transform_0(%arg0: i32, %arg1: i32) -> (i32, i32) {
    %c0_i32 = arith.constant 0 : i32
    %c0_i32_0 = arith.constant 0 : i32
    return %arg0, %c0_i32 : i32, i32
  }
  func.func @transform_1(%arg0: i32, %arg1: i32) -> (i32, i32) {
    %c0_i32 = arith.constant 0 : i32
    %c0_i32_0 = arith.constant 0 : i32
    return %c0_i32, %arg1 : i32, i32
  }
  func.func @transform_2(%arg0: i32, %arg1: i32) -> (i32, i32) {
    %c0_i32 = arith.constant 0 : i32
    %c0_i32_0 = arith.constant 0 : i32
    return %c0_i32, %arg1 : i32, i32
  }
  func.func @transform_3(%arg0: i32, %arg1: i32) -> (i32, i32) {
    %c0_i32 = arith.constant 0 : i32
    return %arg0, %arg1 : i32, i32
  }
}

</mosaic_0001>

<llo_original>
// kernel: tpu_custom_call.1
$region0: #{tpu_custom_call.1}
  #allocation0 [shape = 'u32[]', space=smem, size = 0x4, offset = 0x4, fixed_abs, tag = 'smem constant byte address 0x4 - core index']
  #allocation1 [shape = 'u32[144,128]{1,0:T(1,128)}', space=vmem, size = 0x12000, scoped, tag = 'internal scratch']
  %s0 = inlined_call_operand.hbm [shape: f32[8,128], index: 0, kind: input, shape index: {}]
  %s1 = inlined_call_operand.hbm [shape: f32[8,128], index: 1, kind: output, shape index: {}]
  %s2 = sld [smem:[#allocation0]]
  $region41: #{tpu_custom_call.1} parent=0
    _
  %s4 = ssub.s32 1, %s2
  %s5 = scalar_select 0, %s4, %s2
  $region1: #{tpu_custom_call.1} parent=0
    #allocation2 [shape = 'u8[4096]{0}', space=vmem, size = 0x1000, scoped, tag = 'input window, operand 0, single buffered']
    #allocation3 [shape = 's32[2]{0}', space=sflag, size = 0x8, scoped, tag = 'scoped memory for tpu_custom_call.1']
    #allocation4 [shape = 's32[2]{0}', space=sflag, size = 0x8, scoped, tag = 'scoped memory for tpu_custom_call.1']
    #allocation5 [shape = 'u8[4096]{0}', space=vmem, size = 0x1000, scoped, tag = 'output window, operand 0, single buffered']
    %6 = vsyncpa [#allocation3], 0
    %7 = vsyncpa [#allocation4], 0
    loop: start=0, step=1, limit=4
    $region2: #{tpu_custom_call.1} parent=1 // loop_pre_header
      _
    $region3: #{tpu_custom_call.1} parent=1 // loop_header
      %s9 = sphi 0, %s13
      %p10 = scmp.ge.s32.totalorder %s9, 4
      %s17 = sphi 0, %s17
      %s19 = sphi 0, %s17
      %s20 = sphi 0, %s19
      %s34 = sphi 0, %s20
      %s38 = sphi 0, %s38
      %s40 = sphi 0, %s38
      %s41 = sphi 0, %s40
      %s55 = sphi 0, %s41
    $region4: #{tpu_custom_call.1} parent=1 // loop_header_branch
      %12 = sbr.rel (%p10) target = $region8
    $region5: #{tpu_custom_call.1} parent=1 // loop_body
      %s14 = ssub.s32 %s9, 1
      %s15 = ssub.s32 %s9, 2
      %s16 = sadd.s32 %s9, 1
      %s18 = sadd.s32 %s17, 1
      %p21 = scmp.eq.s32.totalorder %s9, 1
      %p22 = scmp.ne.s32.totalorder %s17, %s19
      %p23 = scmp.eq.s32.totalorder %s9, 0
      %p24 = por %p22, %p23
      %p25 = scmp.ne.s32.totalorder %s17, %s19
      %p26 = scmp.eq.s32.totalorder %s14, 1
      %p27 = por %p25, %p26
      %p28 = scmp.ne.s32.totalorder %s19, %s20
      %p29 = scmp.eq.s32.totalorder %s14, 0
      %p30 = por %p28, %p29
      %p31 = scmp.ne.s32.totalorder %s19, %s20
      %p32 = scmp.eq.s32.totalorder %s15, 1
      %p33 = por %p31, %p32
      %p35 = scmp.ne.s32.totalorder %s20, %s34
      %p36 = scmp.eq.s32.totalorder %s15, 0
      %p37 = por %p35, %p36
      %s39 = sadd.s32 %s38, 1
      %p42 = scmp.eq.s32.totalorder %s9, 1
      %p43 = scmp.ne.s32.totalorder %s38, %s40
      %p44 = scmp.eq.s32.totalorder %s9, 0
      %p45 = por %p43, %p44
      %p46 = scmp.ne.s32.totalorder %s38, %s40
      %p47 = scmp.eq.s32.totalorder %s14, 1
      %p48 = por %p46, %p47
      %p49 = scmp.ne.s32.totalorder %s40, %s41
      %p50 = scmp.eq.s32.totalorder %s14, 0
      %p51 = por %p49, %p50
      %p52 = scmp.ne.s32.totalorder %s40, %s41
      %p53 = scmp.eq.s32.totalorder %s15, 1
      %p54 = por %p52, %p53
      %p56 = scmp.ne.s32.totalorder %s41, %s55
      %p57 = scmp.eq.s32.totalorder %s15, 0
      %p58 = por %p56, %p57
      %p59 = scmp.le.s32.totalorder 1, %s9
      %p60 = scmp.lt.s32.totalorder %s9, 3
      %p61 = pnand %p59, %p60
      %p62 = pneg %p61
      // Predicated region
      $region9: #{tpu_custom_call.1} parent=5 // pred_check
        _
      $region10: #{tpu_custom_call.1} parent=5 // pred_check_branch
        %64 = sbr.rel (%p61) target = $region12
      $region11: #{tpu_custom_call.1} parent=5 // pred_region
        %s65 = ssub.s32 %s9, 1
        // Predicated region
        $region13: #{tpu_custom_call.1} parent=11 // pred_check
          %p66 = pneg %p30
        $region14: #{tpu_custom_call.1} parent=11 // pred_check_branch
          %68 = sbr.rel (%p66) target = $region16
        $region15: #{tpu_custom_call.1} parent=11 // pred_region
          %s70 = ssub.s32 128, 128
          %71 = vsyncadd [#allocation3], %s70
          %s73 = sshll.u32 [#allocation2], 4
          %s74 = int_to_ptr.vmem [resolvable:$true] %s73
          %76 = dma.hbm_to_vmem [thread:$0]  %s0, 128, %s74, [#allocation3]
        $region16: #{tpu_custom_call.1} parent=11 // pred_fallthru
          _
      $region12: #{tpu_custom_call.1} parent=5 // pred_fallthru
        _
      %p77 = scmp.lt.s32.totalorder %s9, 2
      // Predicated region
      $region17: #{tpu_custom_call.1} parent=5 // pred_check
        %p78 = pneg %p77
      $region18: #{tpu_custom_call.1} parent=5 // pred_check_branch
        %80 = sbr.rel (%p78) target = $region20
      $region19: #{tpu_custom_call.1} parent=5 // pred_region
        _
      $region20: #{tpu_custom_call.1} parent=5 // pred_fallthru
        _
      %p81 = scmp.le.s32.totalorder 1, %s9
      %p82 = scmp.lt.s32.totalorder %s9, 3
      %p83 = pnand %p81, %p82
      %p84 = pneg %p83
      // Predicated region
      $region21: #{tpu_custom_call.1} parent=5 // pred_check
        _
      $region22: #{tpu_custom_call.1} parent=5 // pred_check_branch
        %86 = sbr.rel (%p83) target = $region24
      $region23: #{tpu_custom_call.1} parent=5 // pred_region
        %s87 = ssub.s32 %s9, 1
        // Predicated region
        $region25: #{tpu_custom_call.1} parent=23 // pred_check
          %p88 = pneg %p30
        $region26: #{tpu_custom_call.1} parent=23 // pred_check_branch
          %90 = sbr.rel (%p88) target = $region28
        $region27: #{tpu_custom_call.1} parent=23 // pred_region
          %91 = dma.done [#allocation3], 128
        $region28: #{tpu_custom_call.1} parent=23 // pred_fallthru
          _
        %p92 = pneg %p30
        %p93 = pneg %p27
        %p94 = pneg %p51
        %p95 = pneg %p48
        %v96 = vld [vmem:[#allocation2] sm:$0xff]
        %v97 = vadd.f32 %v96, 1.0
        %98 = vst [vmem:[#allocation5] sm:$0xff] %v97
        // Predicated region
        $region29: #{tpu_custom_call.1} parent=23 // pred_check
          %p99 = pneg %p48
        $region30: #{tpu_custom_call.1} parent=23 // pred_check_branch
          %101 = sbr.rel (%p99) target = $region32
        $region31: #{tpu_custom_call.1} parent=23 // pred_region
          %s103 = ssub.s32 128, 128
          %104 = vsyncadd [#allocation4], %s103
          %s106 = sshll.u32 [#allocation5], 4
          %s107 = int_to_ptr.vmem [resolvable:$true] %s106
          %109 = dma.vmem_to_hbm [thread:$0]  %s107, 128, %s1, [#allocation4]
        $region32: #{tpu_custom_call.1} parent=23 // pred_fallthru
          _
        // Predicated region
        $region33: #{tpu_custom_call.1} parent=23 // pred_check
          %p110 = pneg %p48
        $region34: #{tpu_custom_call.1} parent=23 // pred_check_branch
          %112 = sbr.rel (%p110) target = $region36
        $region35: #{tpu_custom_call.1} parent=23 // pred_region
          %113 = dma.done [#allocation4], 128
        $region36: #{tpu_custom_call.1} parent=23 // pred_fallthru
          _
      $region24: #{tpu_custom_call.1} parent=5 // pred_fallthru
        _
      %p114 = scmp.le.s32.totalorder 2, %s9
      // Predicated region
      $region37: #{tpu_custom_call.1} parent=5 // pred_check
        %p115 = pneg %p114
      $region38: #{tpu_custom_call.1} parent=5 // pred_check_branch
        %117 = sbr.rel (%p115) target = $region40
      $region39: #{tpu_custom_call.1} parent=5 // pred_region
        %s118 = ssub.s32 %s9, 2
      $region40: #{tpu_custom_call.1} parent=5 // pred_fallthru
        _
    $region6: #{tpu_custom_call.1} parent=1 // loop_footer
      %s13 = sadd.s32 1, %s9
    $region7: #{tpu_custom_call.1} parent=1 // loop_footer_branch
      %8 = sbr.rel target = $region3
    $region8: #{tpu_custom_call.1} parent=1 // loop_exit
      _
    %119 = vsyncpa [#allocation3], 1
    %s120 = scalar_lea.sflag [#allocation3], 1
    %121 = vsyncpa %s120, 1
    %122 = vsyncpa [#allocation4], 1
    %s123 = scalar_lea.sflag [#allocation4], 1
    %124 = vsyncpa %s123, 1

// kernel: fwd.8
$region0: #{fwd.8}
  #allocation0 [shape = 'u32[]', space=smem, size = 0x4, offset = 0x4, fixed_abs, tag = 'smem constant byte address 0x4 - core index']
  #allocation1 [shape = 'u32[144,128]{1,0:T(1,128)}', space=vmem, size = 0x12000, scoped, tag = 'internal scratch']
  %s0 = inlined_call_operand.vmem [shape: f32[8,8,512], index: 0, kind: input, shape index: {}]
  %s1 = inlined_call_operand.vmem [shape: bf16[128,512], index: 1, kind: input, shape index: {}]
  %s2 = inlined_call_operand.vmem [shape: f32[8,128], index: 2, kind: output, shape index: {0}]
  %s3 = inlined_call_operand.vmem [shape: f32[8,128], index: 3, kind: output, shape index: {1}]
  %4 = xla_tuple %s2, %s3
  %s5 = sld [smem:[#allocation0]]
  $region53: #{fwd.8} parent=0
    _
  %s7 = ssub.s32 1, %s5
  %s8 = scalar_select 0, %s7, %s5
  loop: start=0, step=1, limit=10
  $region2: #{fwd.8} parent=0 // loop_pre_header
    _
  $region3: #{fwd.8} parent=0 // loop_header
    %s10 = sphi 0, %s14
    %p11 = scmp.ge.s32.totalorder %s10, 10
    %s17 = sphi 0, %s29
    %s18 = sphi 0, %s25
    %s19 = sphi 0, %s17
    %s20 = sphi 0, %s18
    %s21 = sphi 0, %s19
    %s22 = sphi 0, %s20
    %s34 = sphi 0, %s36
    %s37 = sphi 0, %s34
    %s38 = sphi 0, %s37
    %s54 = sphi 0, %s38
    %s58 = sphi 0, %s58
    %s60 = sphi 0, %s58
    %s61 = sphi 0, %s60
    %s75 = sphi 0, %s61
    %s81 = sphi 0, %s83
    %s84 = sphi 0, %s81
    %s85 = sphi 0, %s84
    %s101 = sphi 0, %s85
    %s107 = sphi 0, %s109
    %s110 = sphi 0, %s107
    %s111 = sphi 0, %s110
    %s127 = sphi 0, %s111
  $region4: #{fwd.8} parent=0 // loop_header_branch
    %13 = sbr.rel (%p11) target = $region8
  $region5: #{fwd.8} parent=0 // loop_body
    %s15 = ssub.s32 %s10, 1
    %s16 = ssub.s32 %s10, 2
    %s23 = sadd.s32 1, %s18
    %p24 = scmp.ge.s32.totalorder %s23, 8
    %s25 = scalar_select %p24, 0, %s23
    %s26 = sadd.s32 1, %s17
    %s27 = scalar_select %p24, %s26, %s17
    %p28 = scmp.ge.s32.totalorder %s27, 1
    %s29 = scalar_select %p28, 0, %s27
    %s30 = ssub.s32 %s18, %s25
    %s31 = ssub.s32 %s17, %s29
    %s32 = sor.u32 %s30, %s31
    %p33 = scmp.eq.s32.totalorder %s32, 0
    %s35 = sadd.s32 %s34, 1
    %s36 = scalar_select %p33, %s34, %s35
    %p39 = pneg %p33
    %p40 = scmp.eq.s32.totalorder %s10, 7
    %p41 = por %p39, %p40
    %p42 = scmp.ne.s32.totalorder %s34, %s37
    %p43 = scmp.eq.s32.totalorder %s10, 0
    %p44 = por %p42, %p43
    %p45 = scmp.ne.s32.totalorder %s34, %s37
    %p46 = scmp.eq.s32.totalorder %s15, 7
    %p47 = por %p45, %p46
    %p48 = scmp.ne.s32.totalorder %s37, %s38
    %p49 = scmp.eq.s32.totalorder %s15, 0
    %p50 = por %p48, %p49
    %p51 = scmp.ne.s32.totalorder %s37, %s38
    %p52 = scmp.eq.s32.totalorder %s16, 7
    %p53 = por %p51, %p52
    %p55 = scmp.ne.s32.totalorder %s38, %s54
    %p56 = scmp.eq.s32.totalorder %s16, 0
    %p57 = por %p55, %p56
    %s59 = sadd.s32 %s58, 1
    %p62 = scmp.eq.s32.totalorder %s10, 7
    %p63 = scmp.ne.s32.totalorder %s58, %s60
    %p64 = scmp.eq.s32.totalorder %s10, 0
    %p65 = por %p63, %p64
    %p66 = scmp.ne.s32.totalorder %s58, %s60
    %p67 = scmp.eq.s32.totalorder %s15, 7
    %p68 = por %p66, %p67
    %p69 = scmp.ne.s32.totalorder %s60, %s61
    %p70 = scmp.eq.s32.totalorder %s15, 0
    %p71 = por %p69, %p70
    %p72 = scmp.ne.s32.totalorder %s60, %s61
    %p73 = scmp.eq.s32.totalorder %s16, 7
    %p74 = por %p72, %p73
    %p76 = scmp.ne.s32.totalorder %s61, %s75
    %p77 = scmp.eq.s32.totalorder %s16, 0
    %p78 = por %p76, %p77
    %s79 = ssub.s32 %s17, %s29
    %p80 = scmp.eq.s32.totalorder %s79, 0
    %s82 = sadd.s32 %s81, 1
    %s83 = scalar_select %p80, %s81, %s82
    %p86 = pneg %p80
    %p87 = scmp.eq.s32.totalorder %s10, 7
    %p88 = por %p86, %p87
    %p89 = scmp.ne.s32.totalorder %s81, %s84
    %p90 = scmp.eq.s32.totalorder %s10, 0
    %p91 = por %p89, %p90
    %p92 = scmp.ne.s32.totalorder %s81, %s84
    %p93 = scmp.eq.s32.totalorder %s15, 7
    %p94 = por %p92, %p93
    %p95 = scmp.ne.s32.totalorder %s84, %s85
    %p96 = scmp.eq.s32.totalorder %s15, 0
    %p97 = por %p95, %p96
    %p98 = scmp.ne.s32.totalorder %s84, %s85
    %p99 = scmp.eq.s32.totalorder %s16, 7
    %p100 = por %p98, %p99
    %p102 = scmp.ne.s32.totalorder %s85, %s101
    %p103 = scmp.eq.s32.totalorder %s16, 0
    %p104 = por %p102, %p103
    %s105 = ssub.s32 %s17, %s29
    %p106 = scmp.eq.s32.totalorder %s105, 0
    %s108 = sadd.s32 %s107, 1
    %s109 = scalar_select %p106, %s107, %s108
    %p112 = pneg %p106
    %p113 = scmp.eq.s32.totalorder %s10, 7
    %p114 = por %p112, %p113
    %p115 = scmp.ne.s32.totalorder %s107, %s110
    %p116 = scmp.eq.s32.totalorder %s10, 0
    %p117 = por %p115, %p116
    %p118 = scmp.ne.s32.totalorder %s107, %s110
    %p119 = scmp.eq.s32.totalorder %s15, 7
    %p120 = por %p118, %p119
    %p121 = scmp.ne.s32.totalorder %s110, %s111
    %p122 = scmp.eq.s32.totalorder %s15, 0
    %p123 = por %p121, %p122
    %p124 = scmp.ne.s32.totalorder %s110, %s111
    %p125 = scmp.eq.s32.totalorder %s16, 7
    %p126 = por %p124, %p125
    %p128 = scmp.ne.s32.totalorder %s111, %s127
    %p129 = scmp.eq.s32.totalorder %s16, 0
    %p130 = por %p128, %p129
    %p131 = scmp.le.s32.totalorder 1, %s10
    %p132 = scmp.lt.s32.totalorder %s10, 9
    %p133 = pnand %p131, %p132
    %p134 = pneg %p133
    // Predicated region
    $region9: #{fwd.8} parent=5 // pred_check
      _
    $region10: #{fwd.8} parent=5 // pred_check_branch
      %136 = sbr.rel (%p133) target = $region12
    $region11: #{fwd.8} parent=5 // pred_region
      %s137 = ssub.s32 %s10, 1
      // Predicated region
      $region13: #{fwd.8} parent=11 // pred_check
        %p138 = pneg %p71
      $region14: #{fwd.8} parent=11 // pred_check_branch
        %140 = sbr.rel (%p138) target = $region16
      $region15: #{fwd.8} parent=11 // pred_region
        _
      $region16: #{fwd.8} parent=11 // pred_fallthru
        _
    $region12: #{fwd.8} parent=5 // pred_fallthru
      _
    %p141 = scmp.lt.s32.totalorder %s10, 8
    // Predicated region
    $region17: #{fwd.8} parent=5 // pred_check
      %p142 = pneg %p141
    $region18: #{fwd.8} parent=5 // pred_check_branch
      %144 = sbr.rel (%p142) target = $region20
    $region19: #{fwd.8} parent=5 // pred_region
      // Predicated region
      $region21: #{fwd.8} parent=19 // pred_check
        %p145 = pneg %p44
      $region22: #{fwd.8} parent=19 // pred_check_branch
        %147 = sbr.rel (%p145) target = $region24
      $region23: #{fwd.8} parent=19 // pred_region
        %p148 = scmp.lt.s32.totalorder %s18, 7
        %s149 = scalar_select %p148, %s18, 7
        %p150 = scmp.lt.s32.totalorder %s17, 0
        %s151 = scalar_select %p150, %s17, 0
        %s152 = smul.addr %s151, 4
        %s153 = smul.addr %s149, 4
        %s154 = sadd.s32 %s152, %s153
        %s155 = smul.addr %s154, 8
        %s156 = scalar_lea.vmem %s0, %s155
      $region24: #{fwd.8} parent=19 // pred_fallthru
        _
    $region20: #{fwd.8} parent=5 // pred_fallthru
      _
    %p157 = scmp.le.s32.totalorder 1, %s10
    %p158 = scmp.lt.s32.totalorder %s10, 9
    %p159 = pnand %p157, %p158
    %p160 = pneg %p159
    // Predicated region
    $region25: #{fwd.8} parent=5 // pred_check
      _
    $region26: #{fwd.8} parent=5 // pred_check_branch
      %162 = sbr.rel (%p159) target = $region28
    $region27: #{fwd.8} parent=5 // pred_region
      %s163 = ssub.s32 %s10, 1
      %p164 = scmp.lt.s32.totalorder %s20, 7
      %s165 = scalar_select %p164, %s20, 7
      %p166 = scmp.lt.s32.totalorder %s19, 0
      %s167 = scalar_select %p166, %s19, 0
      %s168 = smul.addr %s167, 4
      %s169 = smul.addr %s165, 4
      %s170 = sadd.s32 %s168, %s169
      %s171 = smul.addr %s170, 8
      %s172 = scalar_lea.vmem %s0, %s171
      %p173 = pneg %p50
      %p174 = pneg %p47
      %p175 = pneg %p71
      %p176 = pneg %p68
      %p177 = pneg %p97
      %p178 = pneg %p94
      %p179 = scmp.lt.s32.totalorder %s19, 0
      %s180 = scalar_select %p179, %s19, 0
      %s181 = smul.addr %s180, 8
      %s182 = scalar_lea.vmem %s2, %s181
      %p183 = pneg %p123
      %p184 = pneg %p120
      %p185 = scmp.lt.s32.totalorder %s19, 0
      %s186 = scalar_select %p185, %s19, 0
      %s187 = smul.addr %s186, 8
      %s188 = scalar_lea.vmem %s3, %s187
      %p189 = scmp.lt.s32.totalorder %s20, 7
      %s190 = scalar_select %p189, %s20, 7
      %p191 = scmp.lt.s32.totalorder %s19, 0
      %s192 = scalar_select %p191, %s19, 0
      %s193 = smul.addr %s192, 4
      %s194 = smul.addr %s190, 4
      %s195 = sadd.s32 %s193, %s194
      %s196 = smul.addr %s195, 8
      %s197 = scalar_lea.vmem %s0, %s196
      %p198 = scmp.lt.s32.totalorder %s19, 0
      %s199 = scalar_select %p198, %s19, 0
      %s200 = smul.addr %s199, 8
      %s201 = scalar_lea.vmem %s2, %s200
      %p202 = scmp.lt.s32.totalorder %s19, 0
      %s203 = scalar_select %p202, %s19, 0
      %s204 = smul.addr %s203, 8
      %s205 = scalar_lea.vmem %s3, %s204
      %p207 = scmp.eq.s32.totalorder %s20, 0
      // Predicated region
      $region29: #{fwd.8} parent=27 // pred_check
        %p208 = pneg %p207
      $region30: #{fwd.8} parent=27 // pred_check_branch
        %210 = sbr.rel (%p208) target = $region32
      $region31: #{fwd.8} parent=27 // pred_region
        %211 = vst [vmem:[%s201] sm:$0xff] 0.0
        %212 = vst [vmem:[%s205] sm:$0xff] 0.0
      $region32: #{fwd.8} parent=27 // pred_fallthru
        _
      %v213 = vld [vmem:[%s201] sm:$0xff]
      %v214 = vld [vmem:[%s197] sm:$0xff]
      %v215 = vld [vmem:[%s197 + $0x8] sm:$0xff]
      %v216 = vld [vmem:[%s197 + $0x10] sm:$0xff]
      %v217 = vld [vmem:[%s197 + $0x18] sm:$0xff]
      %v218 = vpack.c.bf16 %v213, %v213
      %v219 = vld [vmem:[%s1] sm:$0xff]
      %v220 = vld [vmem:[%s1 + $0x8] sm:$0xff]
      %v221 = vld [vmem:[%s1 + $0x10] sm:$0xff]
      %v222 = vld [vmem:[%s1 + $0x18] sm:$0xff]
      %v223 = vld [vmem:[%s1 + $0x20] sm:$0xff]
      %v224 = vld [vmem:[%s1 + $0x28] sm:$0xff]
      %v225 = vld [vmem:[%s1 + $0x30] sm:$0xff]
      %v226 = vld [vmem:[%s1 + $0x38] sm:$0xff]
      %v227 = vld [vmem:[%s1 + $0x40] sm:$0xff]
      %v228 = vld [vmem:[%s1 + $0x48] sm:$0xff]
      %v229 = vld [vmem:[%s1 + $0x50] sm:$0xff]
      %v230 = vld [vmem:[%s1 + $0x58] sm:$0xff]
      %v231 = vld [vmem:[%s1 + $0x60] sm:$0xff]
      %v232 = vld [vmem:[%s1 + $0x68] sm:$0xff]
      %v233 = vld [vmem:[%s1 + $0x70] sm:$0xff]
      %v234 = vld [vmem:[%s1 + $0x78] sm:$0xff]
      %v235 = vld [vmem:[%s1 + $0x80] sm:$0xff]
      %v236 = vld [vmem:[%s1 + $0x88] sm:$0xff]
      %v237 = vld [vmem:[%s1 + $0x90] sm:$0xff]
      %v238 = vld [vmem:[%s1 + $0x98] sm:$0xff]
      %v239 = vld [vmem:[%s1 + $0xa0] sm:$0xff]
      %v240 = vld [vmem:[%s1 + $0xa8] sm:$0xff]
      %v241 = vld [vmem:[%s1 + $0xb0] sm:$0xff]
      %v242 = vld [vmem:[%s1 + $0xb8] sm:$0xff]
      %v243 = vld [vmem:[%s1 + $0xc0] sm:$0xff]
      %v244 = vld [vmem:[%s1 + $0xc8] sm:$0xff]
      %v245 = vld [vmem:[%s1 + $0xd0] sm:$0xff]
      %v246 = vld [vmem:[%s1 + $0xd8] sm:$0xff]
      %v247 = vld [vmem:[%s1 + $0xe0] sm:$0xff]
      %v248 = vld [vmem:[%s1 + $0xe8] sm:$0xff]
      %v249 = vld [vmem:[%s1 + $0xf0] sm:$0xff]
      %v250 = vld [vmem:[%s1 + $0xf8] sm:$0xff]
      %v283 = vunpack.c.l.b16 %v219
      %v284 = vunpack.c.h.b16 %v219
      %v285 = vunpack.c.l.b16 %v220
      %v286 = vunpack.c.h.b16 %v220
      %v287 = vunpack.c.l.b16 %v221
      %v288 = vunpack.c.h.b16 %v221
      %v289 = vunpack.c.l.b16 %v222
      %v290 = vunpack.c.h.b16 %v222
      %v291 = vunpack.c.l.b16 %v223
      %v292 = vunpack.c.h.b16 %v223
      %v293 = vunpack.c.l.b16 %v224
      %v294 = vunpack.c.h.b16 %v224
      %v295 = vunpack.c.l.b16 %v225
      %v296 = vunpack.c.h.b16 %v225
      %v297 = vunpack.c.l.b16 %v226
      %v298 = vunpack.c.h.b16 %v226
      %v299 = vunpack.c.l.b16 %v227
      %v300 = vunpack.c.h.b16 %v227
      %v301 = vunpack.c.l.b16 %v228
      %v302 = vunpack.c.h.b16 %v228
      %v303 = vunpack.c.l.b16 %v229
      %v304 = vunpack.c.h.b16 %v229
      %v305 = vunpack.c.l.b16 %v230
      %v306 = vunpack.c.h.b16 %v230
      %v307 = vunpack.c.l.b16 %v231
      %v308 = vunpack.c.h.b16 %v231
      %v309 = vunpack.c.l.b16 %v232
      %v310 = vunpack.c.h.b16 %v232
      %v311 = vunpack.c.l.b16 %v233
      %v312 = vunpack.c.h.b16 %v233
      %v313 = vunpack.c.l.b16 %v234
      %v314 = vunpack.c.h.b16 %v234
      %v315 = vunpack.c.l.b16 %v235
      %v316 = vunpack.c.h.b16 %v235
      %v317 = vunpack.c.l.b16 %v236
      %v318 = vunpack.c.h.b16 %v236
      %v319 = vunpack.c.l.b16 %v237
      %v320 = vunpack.c.h.b16 %v237
      %v321 = vunpack.c.l.b16 %v238
      %v322 = vunpack.c.h.b16 %v238
      %v323 = vunpack.c.l.b16 %v239
      %v324 = vunpack.c.h.b16 %v239
      %v325 = vunpack.c.l.b16 %v240
      %v326 = vunpack.c.h.b16 %v240
      %v327 = vunpack.c.l.b16 %v241
      %v328 = vunpack.c.h.b16 %v241
      %v329 = vunpack.c.l.b16 %v242
      %v330 = vunpack.c.h.b16 %v242
      %v331 = vunpack.c.l.b16 %v243
      %v332 = vunpack.c.h.b16 %v243
      %v333 = vunpack.c.l.b16 %v244
      %v334 = vunpack.c.h.b16 %v244
      %v335 = vunpack.c.l.b16 %v245
      %v336 = vunpack.c.h.b16 %v245
      %v337 = vunpack.c.l.b16 %v246
      %v338 = vunpack.c.h.b16 %v246
      %v339 = vunpack.c.l.b16 %v247
      %v340 = vunpack.c.h.b16 %v247
      %v341 = vunpack.c.l.b16 %v248
      %v342 = vunpack.c.h.b16 %v248
      %v343 = vunpack.c.l.b16 %v249
      %v344 = vunpack.c.h.b16 %v249
      %v345 = vunpack.c.l.b16 %v250
      %v346 = vunpack.c.h.b16 %v250
      %v347 = vpack.c.b16 %v287, %v283
      %v348 = vpack.c.b16 %v288, %v284
      %v349 = vpack.c.b16 %v289, %v285
      %v350 = vpack.c.b16 %v290, %v286
      %v351 = vpack.c.b16 %v295, %v291
      %v352 = vpack.c.b16 %v296, %v292
      %v353 = vpack.c.b16 %v297, %v293
      %v354 = vpack.c.b16 %v298, %v294
      %v355 = vpack.c.b16 %v303, %v299
      %v356 = vpack.c.b16 %v304, %v300
      %v357 = vpack.c.b16 %v305, %v301
      %v358 = vpack.c.b16 %v306, %v302
      %v359 = vpack.c.b16 %v311, %v307
      %v360 = vpack.c.b16 %v312, %v308
      %v361 = vpack.c.b16 %v313, %v309
      %v362 = vpack.c.b16 %v314, %v310
      %v363 = vpack.c.b16 %v319, %v315
      %v364 = vpack.c.b16 %v320, %v316
      %v365 = vpack.c.b16 %v321, %v317
      %v366 = vpack.c.b16 %v322, %v318
      %v367 = vpack.c.b16 %v327, %v323
      %v368 = vpack.c.b16 %v328, %v324
      %v369 = vpack.c.b16 %v329, %v325
      %v370 = vpack.c.b16 %v330, %v326
      %v371 = vpack.c.b16 %v335, %v331
      %v372 = vpack.c.b16 %v336, %v332
      %v373 = vpack.c.b16 %v337, %v333
      %v374 = vpack.c.b16 %v338, %v334
      %v375 = vpack.c.b16 %v343, %v339
      %v376 = vpack.c.b16 %v344, %v340
      %v377 = vpack.c.b16 %v345, %v341
      %v378 = vpack.c.b16 %v346, %v342
      %411 = vmatprep.subr.bf16.mxu0 %v376
      %412 = vmatpush1.bf16.msra.mxu0 %v375
      %413 = vmatprep.subr.bf16.mxu0 %v372
      %414 = vmatpush1.bf16.msra.mxu0 %v371
      %415 = vmatprep.subr.bf16.mxu0 %v368
      %416 = vmatpush1.bf16.msra.mxu0 %v367
      %417 = vmatprep.subr.bf16.mxu0 %v364
      %418 = vmatpush1.bf16.msra.mxu0 %v363
      %419 = vmatprep.subr.bf16.mxu0 %v360
      %420 = vmatpush1.bf16.msra.mxu0 %v359
      %421 = vmatprep.subr.bf16.mxu0 %v356
      %422 = vmatpush1.bf16.msra.mxu0 %v355
      %423 = vmatprep.subr.bf16.mxu0 %v352
      %424 = vmatpush1.bf16.msra.mxu0 %v351
      %425 = vmatprep.subr.bf16.mxu0 %v348
      %426 = vmatpush1.bf16.msra.mxu0 %v347
      %427 = vmatprep.subr.bf16.mxu0 0
      %428 = vmatpush2.bf16.msra.mxu0 0
      %429 = vmatprep.subr.bf16.mxu0 0
      %430 = vmatpush2.bf16.msra.mxu0 0
      %431 = vmatprep.subr.bf16.mxu0 0
      %432 = vmatpush2.bf16.msra.mxu0 0
      %433 = vmatprep.subr.bf16.mxu0 0
      %434 = vmatpush2.bf16.msra.mxu0 0
      %435 = vmatprep.subr.bf16.mxu0 0
      %436 = vmatpush2.bf16.msra.mxu0 0
      %437 = vmatprep.subr.bf16.mxu0 0
      %438 = vmatpush2.bf16.msra.mxu0 0
      %439 = vmatprep.subr.bf16.mxu0 0
      %440 = vmatpush2.bf16.msra.mxu0 0
      %441 = vmatprep.subr.bf16.mxu0 0
      %442 = vmatpush2.bf16.msra.mxu0 0
      %443 = vmatprep.mubr.bf16.mxu0 0
      %444 = vmatmul.mubr.bf16.gmra.mxu0 %v218
      %v445 = vpop.f32.mrf.mxu0
      %v446 = vadd.f32 0.0, %v445
      %v447 = vpop.f32.mrf.mxu0
      %v448 = vadd.f32 0.0, %v447
      %v449 = vpop.f32.mrf.mxu0
      %v450 = vpop.f32.mrf.mxu0
      %451 = vdwg.mxu0
      %452 = vmatprep.subr.bf16.mxu0 %v378
      %453 = vmatpush1.bf16.msra.mxu0 %v377
      %454 = vmatprep.subr.bf16.mxu0 %v374
      %455 = vmatpush1.bf16.msra.mxu0 %v373
      %456 = vmatprep.subr.bf16.mxu0 %v370
      %457 = vmatpush1.bf16.msra.mxu0 %v369
      %458 = vmatprep.subr.bf16.mxu0 %v366
      %459 = vmatpush1.bf16.msra.mxu0 %v365
      %460 = vmatprep.subr.bf16.mxu0 %v362
      %461 = vmatpush1.bf16.msra.mxu0 %v361
      %462 = vmatprep.subr.bf16.mxu0 %v358
      %463 = vmatpush1.bf16.msra.mxu0 %v357
      %464 = vmatprep.subr.bf16.mxu0 %v354
      %465 = vmatpush1.bf16.msra.mxu0 %v353
      %466 = vmatprep.subr.bf16.mxu0 %v350
      %467 = vmatpush1.bf16.msra.mxu0 %v349
      %468 = vmatprep.subr.bf16.mxu0 0
      %469 = vmatpush2.bf16.msra.mxu0 0
      %470 = vmatprep.subr.bf16.mxu0 0
      %471 = vmatpush2.bf16.msra.mxu0 0
      %472 = vmatprep.subr.bf16.mxu0 0
      %473 = vmatpush2.bf16.msra.mxu0 0
      %474 = vmatprep.subr.bf16.mxu0 0
      %475 = vmatpush2.bf16.msra.mxu0 0
      %476 = vmatprep.subr.bf16.mxu0 0
      %477 = vmatpush2.bf16.msra.mxu0 0
      %478 = vmatprep.subr.bf16.mxu0 0
      %479 = vmatpush2.bf16.msra.mxu0 0
      %480 = vmatprep.subr.bf16.mxu0 0
      %481 = vmatpush2.bf16.msra.mxu0 0
      %482 = vmatprep.subr.bf16.mxu0 0
      %483 = vmatpush2.bf16.msra.mxu0 0
      %484 = vmatprep.mubr.bf16.mxu0 0
      %485 = vmatmul.mubr.bf16.gmra.mxu0 %v218
      %v486 = vpop.f32.mrf.mxu0
      %v487 = vadd.f32 0.0, %v486
      %v488 = vpop.f32.mrf.mxu0
      %v489 = vadd.f32 0.0, %v488
      %v490 = vpop.f32.mrf.mxu0
      %v491 = vpop.f32.mrf.mxu0
      %492 = vdwg.mxu0
      %v493 = vadd.f32 %v214, %v446
      %v494 = vadd.f32 %v215, %v448
      %v495 = vadd.f32 %v216, %v487
      %v496 = vadd.f32 %v217, %v489
      %v497 = vld [vmem:[%s205] sm:$0xff]
      %v498 = vxor.u32 %v493, 2147483648
      %v499 = vmul.f32 %v498, 1.442695
      %v500 = vpow.pop %v499
      %v501 = vadd.f32 %v500, 1.0
      %v502 = vrcp.pop %v501
      %v503 = vmul.f32 1.0, %v502
      %v504 = vxor.u32 %v494, 2147483648
      %v505 = vmul.f32 %v504, 1.442695
      %v506 = vpow.pop %v505
      %v507 = vadd.f32 %v506, 1.0
      %v508 = vrcp.pop %v507
      %v509 = vmul.f32 1.0, %v508
      %v510 = vtanh.pop %v495
      %v511 = vxor.u32 %v496, 2147483648
      %v512 = vmul.f32 %v511, 1.442695
      %v513 = vpow.pop %v512
      %v514 = vadd.f32 %v513, 1.0
      %v515 = vrcp.pop %v514
      %v516 = vmul.f32 1.0, %v515
      %v517 = vmul.f32 %v509, %v497
      %v518 = vmul.f32 %v503, %v510
      %v519 = vadd.f32 %v517, %v518
      %v520 = vtanh.pop %v519
      %v521 = vmul.f32 %v516, %v520
      %522 = vst [vmem:[%s201] sm:$0xff] %v521
      %523 = vst [vmem:[%s205] sm:$0xff] %v519
      %p524 = scmp.lt.s32.totalorder %s19, 0
      %s525 = scalar_select %p524, %s19, 0
      %s526 = smul.addr %s525, 8
      %s527 = scalar_lea.vmem %s2, %s526
      %p528 = scmp.lt.s32.totalorder %s19, 0
      %s529 = scalar_select %p528, %s19, 0
      %s530 = smul.addr %s529, 8
      %s531 = scalar_lea.vmem %s3, %s530
      // Predicated region
      $region33: #{fwd.8} parent=27 // pred_check
        %p532 = pneg %p94
      $region34: #{fwd.8} parent=27 // pred_check_branch
        %534 = sbr.rel (%p532) target = $region36
      $region35: #{fwd.8} parent=27 // pred_region
        _
      $region36: #{fwd.8} parent=27 // pred_fallthru
        _
      // Predicated region
      $region37: #{fwd.8} parent=27 // pred_check
        %p535 = pneg %p120
      $region38: #{fwd.8} parent=27 // pred_check_branch
        %537 = sbr.rel (%p535) target = $region40
      $region39: #{fwd.8} parent=27 // pred_region
        _
      $region40: #{fwd.8} parent=27 // pred_fallthru
        _
      // Predicated region
      $region41: #{fwd.8} parent=27 // pred_check
        %p538 = pneg %p94
      $region42: #{fwd.8} parent=27 // pred_check_branch
        %540 = sbr.rel (%p538) target = $region44
      $region43: #{fwd.8} parent=27 // pred_region
        %p541 = scmp.lt.s32.totalorder %s19, 0
        %s542 = scalar_select %p541, %s19, 0
        %s543 = smul.addr %s542, 8
        %s544 = scalar_lea.vmem %s2, %s543
      $region44: #{fwd.8} parent=27 // pred_fallthru
        _
      // Predicated region
      $region45: #{fwd.8} parent=27 // pred_check
        %p545 = pneg %p120
      $region46: #{fwd.8} parent=27 // pred_check_branch
        %547 = sbr.rel (%p545) target = $region48
      $region47: #{fwd.8} parent=27 // pred_region
        %p548 = scmp.lt.s32.totalorder %s19, 0
        %s549 = scalar_select %p548, %s19, 0
        %s550 = smul.addr %s549, 8
        %s551 = scalar_lea.vmem %s3, %s550
      $region48: #{fwd.8} parent=27 // pred_fallthru
        _
    $region28: #{fwd.8} parent=5 // pred_fallthru
      _
    %p552 = scmp.le.s32.totalorder 2, %s10
    // Predicated region
    $region49: #{fwd.8} parent=5 // pred_check
      %p553 = pneg %p552
    $region50: #{fwd.8} parent=5 // pred_check_branch
      %555 = sbr.rel (%p553) target = $region52
    $region51: #{fwd.8} parent=5 // pred_region
      %s556 = ssub.s32 %s10, 2
    $region52: #{fwd.8} parent=5 // pred_fallthru
      _
  $region6: #{fwd.8} parent=0 // loop_footer
    %s14 = sadd.s32 1, %s10
  $region7: #{fwd.8} parent=0 // loop_footer_branch
    %9 = sbr.rel target = $region3
  $region8: #{fwd.8} parent=0 // loop_exit
    _

// kernel: fwd.6
$region0: #{fwd.6}
  #allocation0 [shape = 'u32[]', space=smem, size = 0x4, offset = 0x4, fixed_abs, tag = 'smem constant byte address 0x4 - core index']
  #allocation1 [shape = 'u32[144,128]{1,0:T(1,128)}', space=vmem, size = 0x12000, scoped, tag = 'internal scratch']
  %s0 = inlined_call_operand.vmem [shape: bf16[64,128], index: 0, kind: input, shape index: {}]
  %s1 = inlined_call_operand.vmem [shape: bf16[128,512], index: 1, kind: input, shape index: {}]
  %s2 = inlined_call_operand.vmem [shape: f32[1,512], index: 2, kind: input, shape index: {}]
  %s3 = inlined_call_operand.vmem [shape: f32[64,512], index: 3, kind: output, shape index: {}]
  %s4 = sld [smem:[#allocation0]]
  $region22: #{fwd.6} parent=0
    _
  %s6 = ssub.s32 1, %s4
  %s7 = scalar_select 0, %s6, %s4
  // Predicated region
  $region2: #{fwd.6} parent=0 // pred_check
    _
  $region3: #{fwd.6} parent=0 // pred_check_branch
    %9 = sbr.rel (0) target = $region5
  $region4: #{fwd.6} parent=0 // pred_region
    _
  $region5: #{fwd.6} parent=0 // pred_fallthru
    _
  // Predicated region
  $region6: #{fwd.6} parent=0 // pred_check
    _
  $region7: #{fwd.6} parent=0 // pred_check_branch
    %11 = sbr.rel (0) target = $region9
  $region8: #{fwd.6} parent=0 // pred_region
    _
  $region9: #{fwd.6} parent=0 // pred_fallthru
    _
  // Predicated region
  $region10: #{fwd.6} parent=0 // pred_check
    _
  $region11: #{fwd.6} parent=0 // pred_check_branch
    %13 = sbr.rel (0) target = $region13
  $region12: #{fwd.6} parent=0 // pred_region
    _
  $region13: #{fwd.6} parent=0 // pred_fallthru
    _
  %v15 = vld [vmem:[%s0] sm:$0xf]
  %v16 = vld [vmem:[%s0 + $0x4] sm:$0xf]
  %v17 = vld [vmem:[%s0 + $0x8] sm:$0xf]
  %v18 = vld [vmem:[%s0 + $0xc] sm:$0xf]
  %v19 = vld [vmem:[%s0 + $0x10] sm:$0xf]
  %v20 = vld [vmem:[%s0 + $0x14] sm:$0xf]
  %v21 = vld [vmem:[%s0 + $0x18] sm:$0xf]
  %v22 = vld [vmem:[%s0 + $0x1c] sm:$0xf]
  %v23 = vld [vmem:[%s1] sm:$0xff]
  %v24 = vld [vmem:[%s1 + $0x8] sm:$0xff]
  %v25 = vld [vmem:[%s1 + $0x10] sm:$0xff]
  %v26 = vld [vmem:[%s1 + $0x18] sm:$0xff]
  %v27 = vld [vmem:[%s1 + $0x20] sm:$0xff]
  %v28 = vld [vmem:[%s1 + $0x28] sm:$0xff]
  %v29 = vld [vmem:[%s1 + $0x30] sm:$0xff]
  %v30 = vld [vmem:[%s1 + $0x38] sm:$0xff]
  %v31 = vld [vmem:[%s1 + $0x40] sm:$0xff]
  %v32 = vld [vmem:[%s1 + $0x48] sm:$0xff]
  %v33 = vld [vmem:[%s1 + $0x50] sm:$0xff]
  %v34 = vld [vmem:[%s1 + $0x58] sm:$0xff]
  %v35 = vld [vmem:[%s1 + $0x60] sm:$0xff]
  %v36 = vld [vmem:[%s1 + $0x68] sm:$0xff]
  %v37 = vld [vmem:[%s1 + $0x70] sm:$0xff]
  %v38 = vld [vmem:[%s1 + $0x78] sm:$0xff]
  %v39 = vld [vmem:[%s1 + $0x80] sm:$0xff]
  %v40 = vld [vmem:[%s1 + $0x88] sm:$0xff]
  %v41 = vld [vmem:[%s1 + $0x90] sm:$0xff]
  %v42 = vld [vmem:[%s1 + $0x98] sm:$0xff]
  %v43 = vld [vmem:[%s1 + $0xa0] sm:$0xff]
  %v44 = vld [vmem:[%s1 + $0xa8] sm:$0xff]
  %v45 = vld [vmem:[%s1 + $0xb0] sm:$0xff]
  %v46 = vld [vmem:[%s1 + $0xb8] sm:$0xff]
  %v47 = vld [vmem:[%s1 + $0xc0] sm:$0xff]
  %v48 = vld [vmem:[%s1 + $0xc8] sm:$0xff]
  %v49 = vld [vmem:[%s1 + $0xd0] sm:$0xff]
  %v50 = vld [vmem:[%s1 + $0xd8] sm:$0xff]
  %v51 = vld [vmem:[%s1 + $0xe0] sm:$0xff]
  %v52 = vld [vmem:[%s1 + $0xe8] sm:$0xff]
  %v53 = vld [vmem:[%s1 + $0xf0] sm:$0xff]
  %v54 = vld [vmem:[%s1 + $0xf8] sm:$0xff]
  %v55 = vld [vmem:[%s2] sm:$0xf]
  %v57 = vlaneseq
  %v58 = vshrl.u32 %v57, 7
  %v59 = vsub.s32 0, %v58
  %v60 = vrot.slane %v55, %v59
  %v61 = vlaneseq
  %v62 = vshrl.u32 %v61, 7
  %v63 = vsub.s32 1, %v62
  %v64 = vrot.slane %v55, %v63
  %v65 = vlaneseq
  %v66 = vshrl.u32 %v65, 7
  %v67 = vsub.s32 2, %v66
  %v68 = vrot.slane %v55, %v67
  %v69 = vlaneseq
  %v70 = vshrl.u32 %v69, 7
  %v71 = vsub.s32 3, %v70
  %v72 = vrot.slane %v55, %v71
  %v85 = vunpack.c.l.b16 %v15
  %v86 = vunpack.c.l.b16 %v16
  %v87 = vunpack.c.l.b16 %v17
  %v88 = vunpack.c.l.b16 %v18
  %v89 = vunpack.c.l.b16 %v19
  %v90 = vunpack.c.l.b16 %v20
  %v91 = vunpack.c.l.b16 %v21
  %v92 = vunpack.c.l.b16 %v22
  %v93 = vpack.c.b16 %v86, %v85
  %v94 = vpack.c.b16 %v88, %v87
  %v95 = vpack.c.b16 %v90, %v89
  %v96 = vpack.c.b16 %v92, %v91
  %v133 = vunpack.c.l.b16 %v23
  %v134 = vunpack.c.h.b16 %v23
  %v135 = vunpack.c.l.b16 %v24
  %v136 = vunpack.c.h.b16 %v24
  %v137 = vunpack.c.l.b16 %v25
  %v138 = vunpack.c.h.b16 %v25
  %v139 = vunpack.c.l.b16 %v26
  %v140 = vunpack.c.h.b16 %v26
  %v141 = vunpack.c.l.b16 %v27
  %v142 = vunpack.c.h.b16 %v27
  %v143 = vunpack.c.l.b16 %v28
  %v144 = vunpack.c.h.b16 %v28
  %v145 = vunpack.c.l.b16 %v29
  %v146 = vunpack.c.h.b16 %v29
  %v147 = vunpack.c.l.b16 %v30
  %v148 = vunpack.c.h.b16 %v30
  %v149 = vunpack.c.l.b16 %v31
  %v150 = vunpack.c.h.b16 %v31
  %v151 = vunpack.c.l.b16 %v32
  %v152 = vunpack.c.h.b16 %v32
  %v153 = vunpack.c.l.b16 %v33
  %v154 = vunpack.c.h.b16 %v33
  %v155 = vunpack.c.l.b16 %v34
  %v156 = vunpack.c.h.b16 %v34
  %v157 = vunpack.c.l.b16 %v35
  %v158 = vunpack.c.h.b16 %v35
  %v159 = vunpack.c.l.b16 %v36
  %v160 = vunpack.c.h.b16 %v36
  %v161 = vunpack.c.l.b16 %v37
  %v162 = vunpack.c.h.b16 %v37
  %v163 = vunpack.c.l.b16 %v38
  %v164 = vunpack.c.h.b16 %v38
  %v165 = vunpack.c.l.b16 %v39
  %v166 = vunpack.c.h.b16 %v39
  %v167 = vunpack.c.l.b16 %v40
  %v168 = vunpack.c.h.b16 %v40
  %v169 = vunpack.c.l.b16 %v41
  %v170 = vunpack.c.h.b16 %v41
  %v171 = vunpack.c.l.b16 %v42
  %v172 = vunpack.c.h.b16 %v42
  %v173 = vunpack.c.l.b16 %v43
  %v174 = vunpack.c.h.b16 %v43
  %v175 = vunpack.c.l.b16 %v44
  %v176 = vunpack.c.h.b16 %v44
  %v177 = vunpack.c.l.b16 %v45
  %v178 = vunpack.c.h.b16 %v45
  %v179 = vunpack.c.l.b16 %v46
  %v180 = vunpack.c.h.b16 %v46
  %v181 = vunpack.c.l.b16 %v47
  %v182 = vunpack.c.h.b16 %v47
  %v183 = vunpack.c.l.b16 %v48
  %v184 = vunpack.c.h.b16 %v48
  %v185 = vunpack.c.l.b16 %v49
  %v186 = vunpack.c.h.b16 %v49
  %v187 = vunpack.c.l.b16 %v50
  %v188 = vunpack.c.h.b16 %v50
  %v189 = vunpack.c.l.b16 %v51
  %v190 = vunpack.c.h.b16 %v51
  %v191 = vunpack.c.l.b16 %v52
  %v192 = vunpack.c.h.b16 %v52
  %v193 = vunpack.c.l.b16 %v53
  %v194 = vunpack.c.h.b16 %v53
  %v195 = vunpack.c.l.b16 %v54
  %v196 = vunpack.c.h.b16 %v54
  %v197 = vpack.c.b16 %v137, %v133
  %v198 = vpack.c.b16 %v138, %v134
  %v199 = vpack.c.b16 %v139, %v135
  %v200 = vpack.c.b16 %v140, %v136
  %v201 = vpack.c.b16 %v145, %v141
  %v202 = vpack.c.b16 %v146, %v142
  %v203 = vpack.c.b16 %v147, %v143
  %v204 = vpack.c.b16 %v148, %v144
  %v205 = vpack.c.b16 %v153, %v149
  %v206 = vpack.c.b16 %v154, %v150
  %v207 = vpack.c.b16 %v155, %v151
  %v208 = vpack.c.b16 %v156, %v152
  %v209 = vpack.c.b16 %v161, %v157
  %v210 = vpack.c.b16 %v162, %v158
  %v211 = vpack.c.b16 %v163, %v159
  %v212 = vpack.c.b16 %v164, %v160
  %v213 = vpack.c.b16 %v169, %v165
  %v214 = vpack.c.b16 %v170, %v166
  %v215 = vpack.c.b16 %v171, %v167
  %v216 = vpack.c.b16 %v172, %v168
  %v217 = vpack.c.b16 %v177, %v173
  %v218 = vpack.c.b16 %v178, %v174
  %v219 = vpack.c.b16 %v179, %v175
  %v220 = vpack.c.b16 %v180, %v176
  %v221 = vpack.c.b16 %v185, %v181
  %v222 = vpack.c.b16 %v186, %v182
  %v223 = vpack.c.b16 %v187, %v183
  %v224 = vpack.c.b16 %v188, %v184
  %v225 = vpack.c.b16 %v193, %v189
  %v226 = vpack.c.b16 %v194, %v190
  %v227 = vpack.c.b16 %v195, %v191
  %v228 = vpack.c.b16 %v196, %v192
  %261 = vmatprep.subr.bf16.mxu0 %v226
  %262 = vmatpush1.bf16.msra.mxu0 %v225
  %263 = vmatprep.subr.bf16.mxu0 %v222
  %264 = vmatpush1.bf16.msra.mxu0 %v221
  %265 = vmatprep.subr.bf16.mxu0 %v218
  %266 = vmatpush1.bf16.msra.mxu0 %v217
  %267 = vmatprep.subr.bf16.mxu0 %v214
  %268 = vmatpush1.bf16.msra.mxu0 %v213
  %269 = vmatprep.subr.bf16.mxu0 %v210
  %270 = vmatpush1.bf16.msra.mxu0 %v209
  %271 = vmatprep.subr.bf16.mxu0 %v206
  %272 = vmatpush1.bf16.msra.mxu0 %v205
  %273 = vmatprep.subr.bf16.mxu0 %v202
  %274 = vmatpush1.bf16.msra.mxu0 %v201
  %275 = vmatprep.subr.bf16.mxu0 %v198
  %276 = vmatpush1.bf16.msra.mxu0 %v197
  %277 = vmatprep.subr.bf16.mxu0 0
  %278 = vmatpush2.bf16.msra.mxu0 0
  %279 = vmatprep.subr.bf16.mxu0 0
  %280 = vmatpush2.bf16.msra.mxu0 0
  %281 = vmatprep.subr.bf16.mxu0 0
  %282 = vmatpush2.bf16.msra.mxu0 0
  %283 = vmatprep.subr.bf16.mxu0 0
  %284 = vmatpush2.bf16.msra.mxu0 0
  %285 = vmatprep.subr.bf16.mxu0 0
  %286 = vmatpush2.bf16.msra.mxu0 0
  %287 = vmatprep.subr.bf16.mxu0 0
  %288 = vmatpush2.bf16.msra.mxu0 0
  %289 = vmatprep.subr.bf16.mxu0 0
  %290 = vmatpush2.bf16.msra.mxu0 0
  %291 = vmatprep.subr.bf16.mxu0 0
  %292 = vmatpush2.bf16.msra.mxu0 0
  %293 = vmatprep.mubr.bf16.mxu0 0
  %294 = vmatmul.mubr.bf16.gmra.mxu0 %v93
  %v295 = vpop.f32.mrf.mxu0
  %v296 = vadd.f32 %v60, %v295
  %v297 = vpop.f32.mrf.mxu0
  %v298 = vadd.f32 %v64, %v297
  %v299 = vpop.f32.mrf.mxu0
  %v300 = vadd.f32 %v60, %v299
  %v301 = vpop.f32.mrf.mxu0
  %v302 = vadd.f32 %v64, %v301
  %303 = vmatprep.mubr.bf16.mxu0 0
  %304 = vmatmul.mubr.bf16.gmra.mxu0 %v94
  %v305 = vpop.f32.mrf.mxu0
  %v306 = vadd.f32 %v60, %v305
  %v307 = vpop.f32.mrf.mxu0
  %v308 = vadd.f32 %v64, %v307
  %v309 = vpop.f32.mrf.mxu0
  %v310 = vadd.f32 %v60, %v309
  %v311 = vpop.f32.mrf.mxu0
  %v312 = vadd.f32 %v64, %v311
  %313 = vmatprep.mubr.bf16.mxu0 0
  %314 = vmatmul.mubr.bf16.gmra.mxu0 %v95
  %v315 = vpop.f32.mrf.mxu0
  %v316 = vadd.f32 %v60, %v315
  %v317 = vpop.f32.mrf.mxu0
  %v318 = vadd.f32 %v64, %v317
  %v319 = vpop.f32.mrf.mxu0
  %v320 = vadd.f32 %v60, %v319
  %v321 = vpop.f32.mrf.mxu0
  %v322 = vadd.f32 %v64, %v321
  %323 = vmatprep.mubr.bf16.mxu0 0
  %324 = vmatmul.mubr.bf16.gmra.mxu0 %v96
  %v325 = vpop.f32.mrf.mxu0
  %v326 = vadd.f32 %v60, %v325
  %v327 = vpop.f32.mrf.mxu0
  %v328 = vadd.f32 %v64, %v327
  %v329 = vpop.f32.mrf.mxu0
  %v330 = vadd.f32 %v60, %v329
  %v331 = vpop.f32.mrf.mxu0
  %v332 = vadd.f32 %v64, %v331
  %333 = vdwg.mxu0
  %334 = vmatprep.subr.bf16.mxu0 %v228
  %335 = vmatpush1.bf16.msra.mxu0 %v227
  %336 = vmatprep.subr.bf16.mxu0 %v224
  %337 = vmatpush1.bf16.msra.mxu0 %v223
  %338 = vmatprep.subr.bf16.mxu0 %v220
  %339 = vmatpush1.bf16.msra.mxu0 %v219
  %340 = vmatprep.subr.bf16.mxu0 %v216
  %341 = vmatpush1.bf16.msra.mxu0 %v215
  %342 = vmatprep.subr.bf16.mxu0 %v212
  %343 = vmatpush1.bf16.msra.mxu0 %v211
  %344 = vmatprep.subr.bf16.mxu0 %v208
  %345 = vmatpush1.bf16.msra.mxu0 %v207
  %346 = vmatprep.subr.bf16.mxu0 %v204
  %347 = vmatpush1.bf16.msra.mxu0 %v203
  %348 = vmatprep.subr.bf16.mxu0 %v200
  %349 = vmatpush1.bf16.msra.mxu0 %v199
  %350 = vmatprep.subr.bf16.mxu0 0
  %351 = vmatpush2.bf16.msra.mxu0 0
  %352 = vmatprep.subr.bf16.mxu0 0
  %353 = vmatpush2.bf16.msra.mxu0 0
  %354 = vmatprep.subr.bf16.mxu0 0
  %355 = vmatpush2.bf16.msra.mxu0 0
  %356 = vmatprep.subr.bf16.mxu0 0
  %357 = vmatpush2.bf16.msra.mxu0 0
  %358 = vmatprep.subr.bf16.mxu0 0
  %359 = vmatpush2.bf16.msra.mxu0 0
  %360 = vmatprep.subr.bf16.mxu0 0
  %361 = vmatpush2.bf16.msra.mxu0 0
  %362 = vmatprep.subr.bf16.mxu0 0
  %363 = vmatpush2.bf16.msra.mxu0 0
  %364 = vmatprep.subr.bf16.mxu0 0
  %365 = vmatpush2.bf16.msra.mxu0 0
  %366 = vmatprep.mubr.bf16.mxu0 0
  %367 = vmatmul.mubr.bf16.gmra.mxu0 %v93
  %v368 = vpop.f32.mrf.mxu0
  %v369 = vadd.f32 %v68, %v368
  %v370 = vpop.f32.mrf.mxu0
  %v371 = vadd.f32 %v72, %v370
  %v372 = vpop.f32.mrf.mxu0
  %v373 = vadd.f32 %v68, %v372
  %v374 = vpop.f32.mrf.mxu0
  %v375 = vadd.f32 %v72, %v374
  %376 = vmatprep.mubr.bf16.mxu0 0
  %377 = vmatmul.mubr.bf16.gmra.mxu0 %v94
  %v378 = vpop.f32.mrf.mxu0
  %v379 = vadd.f32 %v68, %v378
  %v380 = vpop.f32.mrf.mxu0
  %v381 = vadd.f32 %v72, %v380
  %v382 = vpop.f32.mrf.mxu0
  %v383 = vadd.f32 %v68, %v382
  %v384 = vpop.f32.mrf.mxu0
  %v385 = vadd.f32 %v72, %v384
  %386 = vmatprep.mubr.bf16.mxu0 0
  %387 = vmatmul.mubr.bf16.gmra.mxu0 %v95
  %v388 = vpop.f32.mrf.mxu0
  %v389 = vadd.f32 %v68, %v388
  %v390 = vpop.f32.mrf.mxu0
  %v391 = vadd.f32 %v72, %v390
  %v392 = vpop.f32.mrf.mxu0
  %v393 = vadd.f32 %v68, %v392
  %v394 = vpop.f32.mrf.mxu0
  %v395 = vadd.f32 %v72, %v394
  %396 = vmatprep.mubr.bf16.mxu0 0
  %397 = vmatmul.mubr.bf16.gmra.mxu0 %v96
  %v398 = vpop.f32.mrf.mxu0
  %v399 = vadd.f32 %v68, %v398
  %v400 = vpop.f32.mrf.mxu0
  %v401 = vadd.f32 %v72, %v400
  %v402 = vpop.f32.mrf.mxu0
  %v403 = vadd.f32 %v68, %v402
  %v404 = vpop.f32.mrf.mxu0
  %v405 = vadd.f32 %v72, %v404
  %406 = vdwg.mxu0
  %407 = vst [vmem:[%s3] sm:$0xff] %v296
  %408 = vst [vmem:[%s3 + $0x8] sm:$0xff] %v298
  %409 = vst [vmem:[%s3 + $0x10] sm:$0xff] %v369
  %410 = vst [vmem:[%s3 + $0x18] sm:$0xff] %v371
  %411 = vst [vmem:[%s3 + $0x20] sm:$0xff] %v300
  %412 = vst [vmem:[%s3 + $0x28] sm:$0xff] %v302
  %413 = vst [vmem:[%s3 + $0x30] sm:$0xff] %v373
  %414 = vst [vmem:[%s3 + $0x38] sm:$0xff] %v375
  %415 = vst [vmem:[%s3 + $0x40] sm:$0xff] %v306
  %416 = vst [vmem:[%s3 + $0x48] sm:$0xff] %v308
  %417 = vst [vmem:[%s3 + $0x50] sm:$0xff] %v379
  %418 = vst [vmem:[%s3 + $0x58] sm:$0xff] %v381
  %419 = vst [vmem:[%s3 + $0x60] sm:$0xff] %v310
  %420 = vst [vmem:[%s3 + $0x68] sm:$0xff] %v312
  %421 = vst [vmem:[%s3 + $0x70] sm:$0xff] %v383
  %422 = vst [vmem:[%s3 + $0x78] sm:$0xff] %v385
  %423 = vst [vmem:[%s3 + $0x80] sm:$0xff] %v316
  %424 = vst [vmem:[%s3 + $0x88] sm:$0xff] %v318
  %425 = vst [vmem:[%s3 + $0x90] sm:$0xff] %v389
  %426 = vst [vmem:[%s3 + $0x98] sm:$0xff] %v391
  %427 = vst [vmem:[%s3 + $0xa0] sm:$0xff] %v320
  %428 = vst [vmem:[%s3 + $0xa8] sm:$0xff] %v322
  %429 = vst [vmem:[%s3 + $0xb0] sm:$0xff] %v393
  %430 = vst [vmem:[%s3 + $0xb8] sm:$0xff] %v395
  %431 = vst [vmem:[%s3 + $0xc0] sm:$0xff] %v326
  %432 = vst [vmem:[%s3 + $0xc8] sm:$0xff] %v328
  %433 = vst [vmem:[%s3 + $0xd0] sm:$0xff] %v399
  %434 = vst [vmem:[%s3 + $0xd8] sm:$0xff] %v401
  %435 = vst [vmem:[%s3 + $0xe0] sm:$0xff] %v330
  %436 = vst [vmem:[%s3 + $0xe8] sm:$0xff] %v332
  %437 = vst [vmem:[%s3 + $0xf0] sm:$0xff] %v403
  %438 = vst [vmem:[%s3 + $0xf8] sm:$0xff] %v405
  // Predicated region
  $region14: #{fwd.6} parent=0 // pred_check
    _
  $region15: #{fwd.6} parent=0 // pred_check_branch
    %440 = sbr.rel (0) target = $region17
  $region16: #{fwd.6} parent=0 // pred_region
    _
  $region17: #{fwd.6} parent=0 // pred_fallthru
    _
  // Predicated region
  $region18: #{fwd.6} parent=0 // pred_check
    _
  $region19: #{fwd.6} parent=0 // pred_check_branch
    %442 = sbr.rel (0) target = $region21
  $region20: #{fwd.6} parent=0 // pred_region
    _
  $region21: #{fwd.6} parent=0 // pred_fallthru
    _

// kernel: fwd.10
$region0: #{fwd.10}
  #allocation0 [shape = 'u32[]', space=smem, size = 0x4, offset = 0x4, fixed_abs, tag = 'smem constant byte address 0x4 - core index']
  #allocation1 [shape = 'u32[144,128]{1,0:T(1,128)}', space=vmem, size = 0x12000, scoped, tag = 'internal scratch']
  #allocation2 [shape = 'f32[8,128]{1,0:T(8,128)}', space=vmem, size = 0x1000, scoped, tag = 'scratch operand']
  #allocation3 [shape = 'f32[8,128]{1,0:T(8,128)}', space=vmem, size = 0x1000, scoped, tag = 'scratch operand']
  %s0 = inlined_call_operand.vmem [shape: f32[8,8,512], index: 0, kind: input, shape index: {}]
  %s1 = inlined_call_operand.vmem [shape: bf16[128,512], index: 1, kind: input, shape index: {}]
  %s2 = inlined_call_operand.vmem [shape: f32[8,512], index: 2, kind: input, shape index: {}]
  %s3 = inlined_call_operand.vmem [shape: bf16[8,1024], index: 3, kind: output, shape index: {}]
  %s4 = sld [smem:[#allocation0]]
  $region49: #{fwd.10} parent=0
    _
  %s6 = ssub.s32 1, %s4
  %s7 = scalar_select 0, %s6, %s4
  loop: start=0, step=1, limit=10
  $region2: #{fwd.10} parent=0 // loop_pre_header
    _
  $region3: #{fwd.10} parent=0 // loop_header
    %s9 = sphi 0, %s13
    %p10 = scmp.ge.s32.totalorder %s9, 10
    %s16 = sphi 0, %s28
    %s17 = sphi 0, %s24
    %s18 = sphi 0, %s16
    %s19 = sphi 0, %s17
    %s20 = sphi 0, %s18
    %s21 = sphi 0, %s19
    %s33 = sphi 0, %s35
    %s36 = sphi 0, %s33
    %s37 = sphi 0, %s36
    %s53 = sphi 0, %s37
    %s57 = sphi 0, %s57
    %s59 = sphi 0, %s57
    %s60 = sphi 0, %s59
    %s74 = sphi 0, %s60
    %s80 = sphi 0, %s82
    %s83 = sphi 0, %s80
    %s84 = sphi 0, %s83
    %s100 = sphi 0, %s84
    %s108 = sphi 0, %s110
    %s111 = sphi 0, %s108
    %s112 = sphi 0, %s111
    %s128 = sphi 0, %s112
  $region4: #{fwd.10} parent=0 // loop_header_branch
    %12 = sbr.rel (%p10) target = $region8
  $region5: #{fwd.10} parent=0 // loop_body
    %s14 = ssub.s32 %s9, 1
    %s15 = ssub.s32 %s9, 2
    %s22 = sadd.s32 1, %s17
    %p23 = scmp.ge.s32.totalorder %s22, 8
    %s24 = scalar_select %p23, 0, %s22
    %s25 = sadd.s32 1, %s16
    %s26 = scalar_select %p23, %s25, %s16
    %p27 = scmp.ge.s32.totalorder %s26, 1
    %s28 = scalar_select %p27, 0, %s26
    %s29 = ssub.s32 %s17, %s24
    %s30 = ssub.s32 %s16, %s28
    %s31 = sor.u32 %s29, %s30
    %p32 = scmp.eq.s32.totalorder %s31, 0
    %s34 = sadd.s32 %s33, 1
    %s35 = scalar_select %p32, %s33, %s34
    %p38 = pneg %p32
    %p39 = scmp.eq.s32.totalorder %s9, 7
    %p40 = por %p38, %p39
    %p41 = scmp.ne.s32.totalorder %s33, %s36
    %p42 = scmp.eq.s32.totalorder %s9, 0
    %p43 = por %p41, %p42
    %p44 = scmp.ne.s32.totalorder %s33, %s36
    %p45 = scmp.eq.s32.totalorder %s14, 7
    %p46 = por %p44, %p45
    %p47 = scmp.ne.s32.totalorder %s36, %s37
    %p48 = scmp.eq.s32.totalorder %s14, 0
    %p49 = por %p47, %p48
    %p50 = scmp.ne.s32.totalorder %s36, %s37
    %p51 = scmp.eq.s32.totalorder %s15, 7
    %p52 = por %p50, %p51
    %p54 = scmp.ne.s32.totalorder %s37, %s53
    %p55 = scmp.eq.s32.totalorder %s15, 0
    %p56 = por %p54, %p55
    %s58 = sadd.s32 %s57, 1
    %p61 = scmp.eq.s32.totalorder %s9, 7
    %p62 = scmp.ne.s32.totalorder %s57, %s59
    %p63 = scmp.eq.s32.totalorder %s9, 0
    %p64 = por %p62, %p63
    %p65 = scmp.ne.s32.totalorder %s57, %s59
    %p66 = scmp.eq.s32.totalorder %s14, 7
    %p67 = por %p65, %p66
    %p68 = scmp.ne.s32.totalorder %s59, %s60
    %p69 = scmp.eq.s32.totalorder %s14, 0
    %p70 = por %p68, %p69
    %p71 = scmp.ne.s32.totalorder %s59, %s60
    %p72 = scmp.eq.s32.totalorder %s15, 7
    %p73 = por %p71, %p72
    %p75 = scmp.ne.s32.totalorder %s60, %s74
    %p76 = scmp.eq.s32.totalorder %s15, 0
    %p77 = por %p75, %p76
    %s78 = ssub.s32 %s16, %s28
    %p79 = scmp.eq.s32.totalorder %s78, 0
    %s81 = sadd.s32 %s80, 1
    %s82 = scalar_select %p79, %s80, %s81
    %p85 = pneg %p79
    %p86 = scmp.eq.s32.totalorder %s9, 7
    %p87 = por %p85, %p86
    %p88 = scmp.ne.s32.totalorder %s80, %s83
    %p89 = scmp.eq.s32.totalorder %s9, 0
    %p90 = por %p88, %p89
    %p91 = scmp.ne.s32.totalorder %s80, %s83
    %p92 = scmp.eq.s32.totalorder %s14, 7
    %p93 = por %p91, %p92
    %p94 = scmp.ne.s32.totalorder %s83, %s84
    %p95 = scmp.eq.s32.totalorder %s14, 0
    %p96 = por %p94, %p95
    %p97 = scmp.ne.s32.totalorder %s83, %s84
    %p98 = scmp.eq.s32.totalorder %s15, 7
    %p99 = por %p97, %p98
    %p101 = scmp.ne.s32.totalorder %s84, %s100
    %p102 = scmp.eq.s32.totalorder %s15, 0
    %p103 = por %p101, %p102
    %s104 = ssub.s32 %s16, %s28
    %s105 = ssub.s32 %s17, %s24
    %s106 = sor.u32 %s104, %s105
    %p107 = scmp.eq.s32.totalorder %s106, 0
    %s109 = sadd.s32 %s108, 1
    %s110 = scalar_select %p107, %s108, %s109
    %p113 = pneg %p107
    %p114 = scmp.eq.s32.totalorder %s9, 7
    %p115 = por %p113, %p114
    %p116 = scmp.ne.s32.totalorder %s108, %s111
    %p117 = scmp.eq.s32.totalorder %s9, 0
    %p118 = por %p116, %p117
    %p119 = scmp.ne.s32.totalorder %s108, %s111
    %p120 = scmp.eq.s32.totalorder %s14, 7
    %p121 = por %p119, %p120
    %p122 = scmp.ne.s32.totalorder %s111, %s112
    %p123 = scmp.eq.s32.totalorder %s14, 0
    %p124 = por %p122, %p123
    %p125 = scmp.ne.s32.totalorder %s111, %s112
    %p126 = scmp.eq.s32.totalorder %s15, 7
    %p127 = por %p125, %p126
    %p129 = scmp.ne.s32.totalorder %s112, %s128
    %p130 = scmp.eq.s32.totalorder %s15, 0
    %p131 = por %p129, %p130
    %p132 = scmp.le.s32.totalorder 1, %s9
    %p133 = scmp.lt.s32.totalorder %s9, 9
    %p134 = pnand %p132, %p133
    %p135 = pneg %p134
    // Predicated region
    $region9: #{fwd.10} parent=5 // pred_check
      _
    $region10: #{fwd.10} parent=5 // pred_check_branch
      %137 = sbr.rel (%p134) target = $region12
    $region11: #{fwd.10} parent=5 // pred_region
      %s138 = ssub.s32 %s9, 1
      // Predicated region
      $region13: #{fwd.10} parent=11 // pred_check
        %p139 = pneg %p70
      $region14: #{fwd.10} parent=11 // pred_check_branch
        %141 = sbr.rel (%p139) target = $region16
      $region15: #{fwd.10} parent=11 // pred_region
        _
      $region16: #{fwd.10} parent=11 // pred_fallthru
        _
      // Predicated region
      $region17: #{fwd.10} parent=11 // pred_check
        %p142 = pneg %p96
      $region18: #{fwd.10} parent=11 // pred_check_branch
        %144 = sbr.rel (%p142) target = $region20
      $region19: #{fwd.10} parent=11 // pred_region
        %p145 = scmp.lt.s32.totalorder %s18, 0
        %s146 = scalar_select %p145, %s18, 0
        %s147 = smul.addr %s146, 4
        %s148 = smul.addr %s147, 8
        %s149 = scalar_lea.vmem %s2, %s148
      $region20: #{fwd.10} parent=11 // pred_fallthru
        _
    $region12: #{fwd.10} parent=5 // pred_fallthru
      _
    %p150 = scmp.lt.s32.totalorder %s9, 8
    // Predicated region
    $region21: #{fwd.10} parent=5 // pred_check
      %p151 = pneg %p150
    $region22: #{fwd.10} parent=5 // pred_check_branch
      %153 = sbr.rel (%p151) target = $region24
    $region23: #{fwd.10} parent=5 // pred_region
      // Predicated region
      $region25: #{fwd.10} parent=23 // pred_check
        %p154 = pneg %p43
      $region26: #{fwd.10} parent=23 // pred_check_branch
        %156 = sbr.rel (%p154) target = $region28
      $region27: #{fwd.10} parent=23 // pred_region
        %p157 = scmp.lt.s32.totalorder %s17, 7
        %s158 = scalar_select %p157, %s17, 7
        %p159 = scmp.lt.s32.totalorder %s16, 0
        %s160 = scalar_select %p159, %s16, 0
        %s161 = smul.addr %s160, 4
        %s162 = smul.addr %s158, 4
        %s163 = sadd.s32 %s161, %s162
        %s164 = smul.addr %s163, 8
        %s165 = scalar_lea.vmem %s0, %s164
      $region28: #{fwd.10} parent=23 // pred_fallthru
        _
    $region24: #{fwd.10} parent=5 // pred_fallthru
      _
    %p166 = scmp.le.s32.totalorder 1, %s9
    %p167 = scmp.lt.s32.totalorder %s9, 9
    %p168 = pnand %p166, %p167
    %p169 = pneg %p168
    // Predicated region
    $region29: #{fwd.10} parent=5 // pred_check
      _
    $region30: #{fwd.10} parent=5 // pred_check_branch
      %171 = sbr.rel (%p168) target = $region32
    $region31: #{fwd.10} parent=5 // pred_region
      %s172 = ssub.s32 %s9, 1
      %p173 = scmp.lt.s32.totalorder %s19, 7
      %s174 = scalar_select %p173, %s19, 7
      %p175 = scmp.lt.s32.totalorder %s18, 0
      %s176 = scalar_select %p175, %s18, 0
      %s177 = smul.addr %s176, 4
      %s178 = smul.addr %s174, 4
      %s179 = sadd.s32 %s177, %s178
      %s180 = smul.addr %s179, 8
      %s181 = scalar_lea.vmem %s0, %s180
      %p182 = pneg %p49
      %p183 = pneg %p46
      %p184 = pneg %p70
      %p185 = pneg %p67
      %p186 = scmp.lt.s32.totalorder %s18, 0
      %s187 = scalar_select %p186, %s18, 0
      %s188 = smul.addr %s187, 4
      %s189 = smul.addr %s188, 8
      %s190 = scalar_lea.vmem %s2, %s189
      %p191 = pneg %p96
      %p192 = pneg %p93
      %p193 = pneg %p124
      %p194 = pneg %p121
      %p195 = scmp.lt.s32.totalorder %s18, 0
      %s196 = scalar_select %p195, %s18, 0
      %p197 = scmp.lt.s32.totalorder %s19, 7
      %s198 = scalar_select %p197, %s19, 7
      %s199 = smul.addr %s196, 8
      %s200 = sadd.s32 %s198, %s199
      %s201 = smul.addr %s200, 4
      %s202 = scalar_lea.vmem %s3, %s201
      %p203 = scmp.lt.s32.totalorder %s19, 7
      %s204 = scalar_select %p203, %s19, 7
      %p205 = scmp.lt.s32.totalorder %s18, 0
      %s206 = scalar_select %p205, %s18, 0
      %s207 = smul.addr %s206, 4
      %s208 = smul.addr %s204, 4
      %s209 = sadd.s32 %s207, %s208
      %s210 = smul.addr %s209, 8
      %s211 = scalar_lea.vmem %s0, %s210
      %p212 = scmp.lt.s32.totalorder %s18, 0
      %s213 = scalar_select %p212, %s18, 0
      %s214 = smul.addr %s213, 4
      %s215 = smul.addr %s214, 8
      %s216 = scalar_lea.vmem %s2, %s215
      %p217 = scmp.lt.s32.totalorder %s18, 0
      %s218 = scalar_select %p217, %s18, 0
      %p219 = scmp.lt.s32.totalorder %s19, 7
      %s220 = scalar_select %p219, %s19, 7
      %s221 = smul.addr %s218, 8
      %s222 = sadd.s32 %s220, %s221
      %s223 = smul.addr %s222, 4
      %s224 = scalar_lea.vmem %s3, %s223
      %p226 = scmp.eq.s32.totalorder %s19, 0
      // Predicated region
      $region33: #{fwd.10} parent=31 // pred_check
        %p227 = pneg %p226
      $region34: #{fwd.10} parent=31 // pred_check_branch
        %229 = sbr.rel (%p227) target = $region36
      $region35: #{fwd.10} parent=31 // pred_region
        %230 = vst [vmem:[#allocation2] sm:$0xff] 0.0
        %231 = vst [vmem:[#allocation3] sm:$0xff] 0.0
      $region36: #{fwd.10} parent=31 // pred_fallthru
        _
      %v232 = vld [vmem:[#allocation2] sm:$0xff]
      %v233 = vld [vmem:[%s211] sm:$0xff]
      %v234 = vld [vmem:[%s211 + $0x8] sm:$0xff]
      %v235 = vld [vmem:[%s211 + $0x10] sm:$0xff]
      %v236 = vld [vmem:[%s211 + $0x18] sm:$0xff]
      %v237 = vld [vmem:[%s216] sm:$0xff]
      %v238 = vld [vmem:[%s216 + $0x8] sm:$0xff]
      %v239 = vld [vmem:[%s216 + $0x10] sm:$0xff]
      %v240 = vld [vmem:[%s216 + $0x18] sm:$0xff]
      %v241 = vadd.f32 %v233, %v237
      %v242 = vadd.f32 %v234, %v238
      %v243 = vadd.f32 %v235, %v239
      %v244 = vadd.f32 %v236, %v240
      %v245 = vpack.c.bf16 %v232, %v232
      %v246 = vld [vmem:[%s1] sm:$0xff]
      %v247 = vld [vmem:[%s1 + $0x8] sm:$0xff]
      %v248 = vld [vmem:[%s1 + $0x10] sm:$0xff]
      %v249 = vld [vmem:[%s1 + $0x18] sm:$0xff]
      %v250 = vld [vmem:[%s1 + $0x20] sm:$0xff]
      %v251 = vld [vmem:[%s1 + $0x28] sm:$0xff]
      %v252 = vld [vmem:[%s1 + $0x30] sm:$0xff]
      %v253 = vld [vmem:[%s1 + $0x38] sm:$0xff]
      %v254 = vld [vmem:[%s1 + $0x40] sm:$0xff]
      %v255 = vld [vmem:[%s1 + $0x48] sm:$0xff]
      %v256 = vld [vmem:[%s1 + $0x50] sm:$0xff]
      %v257 = vld [vmem:[%s1 + $0x58] sm:$0xff]
      %v258 = vld [vmem:[%s1 + $0x60] sm:$0xff]
      %v259 = vld [vmem:[%s1 + $0x68] sm:$0xff]
      %v260 = vld [vmem:[%s1 + $0x70] sm:$0xff]
      %v261 = vld [vmem:[%s1 + $0x78] sm:$0xff]
      %v262 = vld [vmem:[%s1 + $0x80] sm:$0xff]
      %v263 = vld [vmem:[%s1 + $0x88] sm:$0xff]
      %v264 = vld [vmem:[%s1 + $0x90] sm:$0xff]
      %v265 = vld [vmem:[%s1 + $0x98] sm:$0xff]
      %v266 = vld [vmem:[%s1 + $0xa0] sm:$0xff]
      %v267 = vld [vmem:[%s1 + $0xa8] sm:$0xff]
      %v268 = vld [vmem:[%s1 + $0xb0] sm:$0xff]
      %v269 = vld [vmem:[%s1 + $0xb8] sm:$0xff]
      %v270 = vld [vmem:[%s1 + $0xc0] sm:$0xff]
      %v271 = vld [vmem:[%s1 + $0xc8] sm:$0xff]
      %v272 = vld [vmem:[%s1 + $0xd0] sm:$0xff]
      %v273 = vld [vmem:[%s1 + $0xd8] sm:$0xff]
      %v274 = vld [vmem:[%s1 + $0xe0] sm:$0xff]
      %v275 = vld [vmem:[%s1 + $0xe8] sm:$0xff]
      %v276 = vld [vmem:[%s1 + $0xf0] sm:$0xff]
      %v277 = vld [vmem:[%s1 + $0xf8] sm:$0xff]
      %v310 = vunpack.c.l.b16 %v246
      %v311 = vunpack.c.h.b16 %v246
      %v312 = vunpack.c.l.b16 %v247
      %v313 = vunpack.c.h.b16 %v247
      %v314 = vunpack.c.l.b16 %v248
      %v315 = vunpack.c.h.b16 %v248
      %v316 = vunpack.c.l.b16 %v249
      %v317 = vunpack.c.h.b16 %v249
      %v318 = vunpack.c.l.b16 %v250
      %v319 = vunpack.c.h.b16 %v250
      %v320 = vunpack.c.l.b16 %v251
      %v321 = vunpack.c.h.b16 %v251
      %v322 = vunpack.c.l.b16 %v252
      %v323 = vunpack.c.h.b16 %v252
      %v324 = vunpack.c.l.b16 %v253
      %v325 = vunpack.c.h.b16 %v253
      %v326 = vunpack.c.l.b16 %v254
      %v327 = vunpack.c.h.b16 %v254
      %v328 = vunpack.c.l.b16 %v255
      %v329 = vunpack.c.h.b16 %v255
      %v330 = vunpack.c.l.b16 %v256
      %v331 = vunpack.c.h.b16 %v256
      %v332 = vunpack.c.l.b16 %v257
      %v333 = vunpack.c.h.b16 %v257
      %v334 = vunpack.c.l.b16 %v258
      %v335 = vunpack.c.h.b16 %v258
      %v336 = vunpack.c.l.b16 %v259
      %v337 = vunpack.c.h.b16 %v259
      %v338 = vunpack.c.l.b16 %v260
      %v339 = vunpack.c.h.b16 %v260
      %v340 = vunpack.c.l.b16 %v261
      %v341 = vunpack.c.h.b16 %v261
      %v342 = vunpack.c.l.b16 %v262
      %v343 = vunpack.c.h.b16 %v262
      %v344 = vunpack.c.l.b16 %v263
      %v345 = vunpack.c.h.b16 %v263
      %v346 = vunpack.c.l.b16 %v264
      %v347 = vunpack.c.h.b16 %v264
      %v348 = vunpack.c.l.b16 %v265
      %v349 = vunpack.c.h.b16 %v265
      %v350 = vunpack.c.l.b16 %v266
      %v351 = vunpack.c.h.b16 %v266
      %v352 = vunpack.c.l.b16 %v267
      %v353 = vunpack.c.h.b16 %v267
      %v354 = vunpack.c.l.b16 %v268
      %v355 = vunpack.c.h.b16 %v268
      %v356 = vunpack.c.l.b16 %v269
      %v357 = vunpack.c.h.b16 %v269
      %v358 = vunpack.c.l.b16 %v270
      %v359 = vunpack.c.h.b16 %v270
      %v360 = vunpack.c.l.b16 %v271
      %v361 = vunpack.c.h.b16 %v271
      %v362 = vunpack.c.l.b16 %v272
      %v363 = vunpack.c.h.b16 %v272
      %v364 = vunpack.c.l.b16 %v273
      %v365 = vunpack.c.h.b16 %v273
      %v366 = vunpack.c.l.b16 %v274
      %v367 = vunpack.c.h.b16 %v274
      %v368 = vunpack.c.l.b16 %v275
      %v369 = vunpack.c.h.b16 %v275
      %v370 = vunpack.c.l.b16 %v276
      %v371 = vunpack.c.h.b16 %v276
      %v372 = vunpack.c.l.b16 %v277
      %v373 = vunpack.c.h.b16 %v277
      %v374 = vpack.c.b16 %v314, %v310
      %v375 = vpack.c.b16 %v315, %v311
      %v376 = vpack.c.b16 %v316, %v312
      %v377 = vpack.c.b16 %v317, %v313
      %v378 = vpack.c.b16 %v322, %v318
      %v379 = vpack.c.b16 %v323, %v319
      %v380 = vpack.c.b16 %v324, %v320
      %v381 = vpack.c.b16 %v325, %v321
      %v382 = vpack.c.b16 %v330, %v326
      %v383 = vpack.c.b16 %v331, %v327
      %v384 = vpack.c.b16 %v332, %v328
      %v385 = vpack.c.b16 %v333, %v329
      %v386 = vpack.c.b16 %v338, %v334
      %v387 = vpack.c.b16 %v339, %v335
      %v388 = vpack.c.b16 %v340, %v336
      %v389 = vpack.c.b16 %v341, %v337
      %v390 = vpack.c.b16 %v346, %v342
      %v391 = vpack.c.b16 %v347, %v343
      %v392 = vpack.c.b16 %v348, %v344
      %v393 = vpack.c.b16 %v349, %v345
      %v394 = vpack.c.b16 %v354, %v350
      %v395 = vpack.c.b16 %v355, %v351
      %v396 = vpack.c.b16 %v356, %v352
      %v397 = vpack.c.b16 %v357, %v353
      %v398 = vpack.c.b16 %v362, %v358
      %v399 = vpack.c.b16 %v363, %v359
      %v400 = vpack.c.b16 %v364, %v360
      %v401 = vpack.c.b16 %v365, %v361
      %v402 = vpack.c.b16 %v370, %v366
      %v403 = vpack.c.b16 %v371, %v367
      %v404 = vpack.c.b16 %v372, %v368
      %v405 = vpack.c.b16 %v373, %v369
      %438 = vmatprep.subr.bf16.mxu0 %v403
      %439 = vmatpush1.bf16.msra.mxu0 %v402
      %440 = vmatprep.subr.bf16.mxu0 %v399
      %441 = vmatpush1.bf16.msra.mxu0 %v398
      %442 = vmatprep.subr.bf16.mxu0 %v395
      %443 = vmatpush1.bf16.msra.mxu0 %v394
      %444 = vmatprep.subr.bf16.mxu0 %v391
      %445 = vmatpush1.bf16.msra.mxu0 %v390
      %446 = vmatprep.subr.bf16.mxu0 %v387
      %447 = vmatpush1.bf16.msra.mxu0 %v386
      %448 = vmatprep.subr.bf16.mxu0 %v383
      %449 = vmatpush1.bf16.msra.mxu0 %v382
      %450 = vmatprep.subr.bf16.mxu0 %v379
      %451 = vmatpush1.bf16.msra.mxu0 %v378
      %452 = vmatprep.subr.bf16.mxu0 %v375
      %453 = vmatpush1.bf16.msra.mxu0 %v374
      %454 = vmatprep.subr.bf16.mxu0 0
      %455 = vmatpush2.bf16.msra.mxu0 0
      %456 = vmatprep.subr.bf16.mxu0 0
      %457 = vmatpush2.bf16.msra.mxu0 0
      %458 = vmatprep.subr.bf16.mxu0 0
      %459 = vmatpush2.bf16.msra.mxu0 0
      %460 = vmatprep.subr.bf16.mxu0 0
      %461 = vmatpush2.bf16.msra.mxu0 0
      %462 = vmatprep.subr.bf16.mxu0 0
      %463 = vmatpush2.bf16.msra.mxu0 0
      %464 = vmatprep.subr.bf16.mxu0 0
      %465 = vmatpush2.bf16.msra.mxu0 0
      %466 = vmatprep.subr.bf16.mxu0 0
      %467 = vmatpush2.bf16.msra.mxu0 0
      %468 = vmatprep.subr.bf16.mxu0 0
      %469 = vmatpush2.bf16.msra.mxu0 0
      %470 = vmatprep.mubr.bf16.mxu0 0
      %471 = vmatmul.mubr.bf16.gmra.mxu0 %v245
      %v472 = vpop.f32.mrf.mxu0
      %v473 = vadd.f32 0.0, %v472
      %v474 = vpop.f32.mrf.mxu0
      %v475 = vadd.f32 0.0, %v474
      %v476 = vpop.f32.mrf.mxu0
      %v477 = vpop.f32.mrf.mxu0
      %478 = vdwg.mxu0
      %479 = vmatprep.subr.bf16.mxu0 %v405
      %480 = vmatpush1.bf16.msra.mxu0 %v404
      %481 = vmatprep.subr.bf16.mxu0 %v401
      %482 = vmatpush1.bf16.msra.mxu0 %v400
      %483 = vmatprep.subr.bf16.mxu0 %v397
      %484 = vmatpush1.bf16.msra.mxu0 %v396
      %485 = vmatprep.subr.bf16.mxu0 %v393
      %486 = vmatpush1.bf16.msra.mxu0 %v392
      %487 = vmatprep.subr.bf16.mxu0 %v389
      %488 = vmatpush1.bf16.msra.mxu0 %v388
      %489 = vmatprep.subr.bf16.mxu0 %v385
      %490 = vmatpush1.bf16.msra.mxu0 %v384
      %491 = vmatprep.subr.bf16.mxu0 %v381
      %492 = vmatpush1.bf16.msra.mxu0 %v380
      %493 = vmatprep.subr.bf16.mxu0 %v377
      %494 = vmatpush1.bf16.msra.mxu0 %v376
      %495 = vmatprep.subr.bf16.mxu0 0
      %496 = vmatpush2.bf16.msra.mxu0 0
      %497 = vmatprep.subr.bf16.mxu0 0
      %498 = vmatpush2.bf16.msra.mxu0 0
      %499 = vmatprep.subr.bf16.mxu0 0
      %500 = vmatpush2.bf16.msra.mxu0 0
      %501 = vmatprep.subr.bf16.mxu0 0
      %502 = vmatpush2.bf16.msra.mxu0 0
      %503 = vmatprep.subr.bf16.mxu0 0
      %504 = vmatpush2.bf16.msra.mxu0 0
      %505 = vmatprep.subr.bf16.mxu0 0
      %506 = vmatpush2.bf16.msra.mxu0 0
      %507 = vmatprep.subr.bf16.mxu0 0
      %508 = vmatpush2.bf16.msra.mxu0 0
      %509 = vmatprep.subr.bf16.mxu0 0
      %510 = vmatpush2.bf16.msra.mxu0 0
      %511 = vmatprep.mubr.bf16.mxu0 0
      %512 = vmatmul.mubr.bf16.gmra.mxu0 %v245
      %v513 = vpop.f32.mrf.mxu0
      %v514 = vadd.f32 0.0, %v513
      %v515 = vpop.f32.mrf.mxu0
      %v516 = vadd.f32 0.0, %v515
      %v517 = vpop.f32.mrf.mxu0
      %v518 = vpop.f32.mrf.mxu0
      %519 = vdwg.mxu0
      %v520 = vadd.f32 %v241, %v473
      %v521 = vadd.f32 %v242, %v475
      %v522 = vadd.f32 %v243, %v514
      %v523 = vadd.f32 %v244, %v516
      %v524 = vld [vmem:[#allocation3] sm:$0xff]
      %v525 = vxor.u32 %v520, 2147483648
      %v526 = vmul.f32 %v525, 1.442695
      %v527 = vpow.pop %v526
      %v528 = vadd.f32 %v527, 1.0
      %v529 = vrcp.pop %v528
      %v530 = vmul.f32 1.0, %v529
      %v531 = vxor.u32 %v521, 2147483648
      %v532 = vmul.f32 %v531, 1.442695
      %v533 = vpow.pop %v532
      %v534 = vadd.f32 %v533, 1.0
      %v535 = vrcp.pop %v534
      %v536 = vmul.f32 1.0, %v535
      %v537 = vtanh.pop %v522
      %v538 = vxor.u32 %v523, 2147483648
      %v539 = vmul.f32 %v538, 1.442695
      %v540 = vpow.pop %v539
      %v541 = vadd.f32 %v540, 1.0
      %v542 = vrcp.pop %v541
      %v543 = vmul.f32 1.0, %v542
      %v544 = vmul.f32 %v536, %v524
      %v545 = vmul.f32 %v530, %v537
      %v546 = vadd.f32 %v544, %v545
      %v547 = vtanh.pop %v546
      %v548 = vmul.f32 %v543, %v547
      %549 = vst [vmem:[#allocation2] sm:$0xff] %v548
      %550 = vst [vmem:[#allocation3] sm:$0xff] %v546
      %v551 = vpack.c.bf16 %v548, %v548
      %552 = vst [vmem:[%s224] sm:$0xf] %v551
      %p553 = scmp.lt.s32.totalorder %s18, 0
      %s554 = scalar_select %p553, %s18, 0
      %p555 = scmp.lt.s32.totalorder %s19, 7
      %s556 = scalar_select %p555, %s19, 7
      %s557 = smul.addr %s554, 8
      %s558 = sadd.s32 %s556, %s557
      %s559 = smul.addr %s558, 4
      %s560 = scalar_lea.vmem %s3, %s559
      // Predicated region
      $region37: #{fwd.10} parent=31 // pred_check
        %p561 = pneg %p121
      $region38: #{fwd.10} parent=31 // pred_check_branch
        %563 = sbr.rel (%p561) target = $region40
      $region39: #{fwd.10} parent=31 // pred_region
        _
      $region40: #{fwd.10} parent=31 // pred_fallthru
        _
    $region32: #{fwd.10} parent=5 // pred_fallthru
      _
    %p564 = scmp.le.s32.totalorder 2, %s9
    // Predicated region
    $region41: #{fwd.10} parent=5 // pred_check
      %p565 = pneg %p564
    $region42: #{fwd.10} parent=5 // pred_check_branch
      %567 = sbr.rel (%p565) target = $region44
    $region43: #{fwd.10} parent=5 // pred_region
      %s568 = ssub.s32 %s9, 2
      // Predicated region
      $region45: #{fwd.10} parent=43 // pred_check
        %p569 = pneg %p127
      $region46: #{fwd.10} parent=43 // pred_check_branch
        %571 = sbr.rel (%p569) target = $region48
      $region47: #{fwd.10} parent=43 // pred_region
        %p572 = scmp.lt.s32.totalorder %s20, 0
        %s573 = scalar_select %p572, %s20, 0
        %p574 = scmp.lt.s32.totalorder %s21, 7
        %s575 = scalar_select %p574, %s21, 7
        %s576 = smul.addr %s573, 8
        %s577 = sadd.s32 %s575, %s576
        %s578 = smul.addr %s577, 4
        %s579 = scalar_lea.vmem %s3, %s578
      $region48: #{fwd.10} parent=43 // pred_fallthru
        _
    $region44: #{fwd.10} parent=5 // pred_fallthru
      _
  $region6: #{fwd.10} parent=0 // loop_footer
    %s13 = sadd.s32 1, %s9
  $region7: #{fwd.10} parent=0 // loop_footer_branch
    %8 = sbr.rel target = $region3
  $region8: #{fwd.10} parent=0 // loop_exit
    _

// kernel: fwd.9
$region0: #{fwd.9}
  #allocation0 [shape = 'u32[]', space=smem, size = 0x4, offset = 0x4, fixed_abs, tag = 'smem constant byte address 0x4 - core index']
  #allocation1 [shape = 'u32[144,128]{1,0:T(1,128)}', space=vmem, size = 0x12000, scoped, tag = 'internal scratch']
  %s0 = inlined_call_operand.vmem [shape: f32[8,256], index: 0, kind: input, shape index: {}]
  %s1 = inlined_call_operand.vmem [shape: bf16[256,32], index: 1, kind: input, shape index: {}]
  %s2 = inlined_call_operand.vmem [shape: f32[1,32], index: 2, kind: input, shape index: {}]
  %s3 = inlined_call_operand.vmem [shape: bf16[256,32], index: 3, kind: input, shape index: {}]
  %s4 = inlined_call_operand.vmem [shape: f32[1,32], index: 4, kind: input, shape index: {}]
  %s5 = inlined_call_operand.vmem [shape: f32[8,32], index: 5, kind: input, shape index: {}]
  %s6 = inlined_call_operand.vmem [shape: bf16[32,512], index: 6, kind: input, shape index: {}]
  %s7 = inlined_call_operand.vmem [shape: f32[8,512], index: 7, kind: output, shape index: {}]
  %s8 = sld [smem:[#allocation0]]
  $region38: #{fwd.9} parent=0
    _
  %s10 = ssub.s32 1, %s8
  %s11 = scalar_select 0, %s10, %s8
  // Predicated region
  $region2: #{fwd.9} parent=0 // pred_check
    _
  $region3: #{fwd.9} parent=0 // pred_check_branch
    %13 = sbr.rel (0) target = $region5
  $region4: #{fwd.9} parent=0 // pred_region
    _
  $region5: #{fwd.9} parent=0 // pred_fallthru
    _
  // Predicated region
  $region6: #{fwd.9} parent=0 // pred_check
    _
  $region7: #{fwd.9} parent=0 // pred_check_branch
    %15 = sbr.rel (0) target = $region9
  $region8: #{fwd.9} parent=0 // pred_region
    _
  $region9: #{fwd.9} parent=0 // pred_fallthru
    _
  // Predicated region
  $region10: #{fwd.9} parent=0 // pred_check
    _
  $region11: #{fwd.9} parent=0 // pred_check_branch
    %17 = sbr.rel (0) target = $region13
  $region12: #{fwd.9} parent=0 // pred_region
    _
  $region13: #{fwd.9} parent=0 // pred_fallthru
    _
  // Predicated region
  $region14: #{fwd.9} parent=0 // pred_check
    _
  $region15: #{fwd.9} parent=0 // pred_check_branch
    %19 = sbr.rel (0) target = $region17
  $region16: #{fwd.9} parent=0 // pred_region
    _
  $region17: #{fwd.9} parent=0 // pred_fallthru
    _
  // Predicated region
  $region18: #{fwd.9} parent=0 // pred_check
    _
  $region19: #{fwd.9} parent=0 // pred_check_branch
    %21 = sbr.rel (0) target = $region21
  $region20: #{fwd.9} parent=0 // pred_region
    _
  $region21: #{fwd.9} parent=0 // pred_fallthru
    _
  // Predicated region
  $region22: #{fwd.9} parent=0 // pred_check
    _
  $region23: #{fwd.9} parent=0 // pred_check_branch
    %23 = sbr.rel (0) target = $region25
  $region24: #{fwd.9} parent=0 // pred_region
    _
  $region25: #{fwd.9} parent=0 // pred_fallthru
    _
  // Predicated region
  $region26: #{fwd.9} parent=0 // pred_check
    _
  $region27: #{fwd.9} parent=0 // pred_check_branch
    %25 = sbr.rel (0) target = $region29
  $region28: #{fwd.9} parent=0 // pred_region
    _
  $region29: #{fwd.9} parent=0 // pred_fallthru
    _
  %v27 = vld [vmem:[%s0] sm:$0xff]
  %v28 = vld [vmem:[%s0 + $0x8] sm:$0xff]
  %v29 = vpack.c.bf16 %v27, %v27
  %v30 = vpack.c.bf16 %v28, %v28
  %v31 = vld [vmem:[%s1] sm:$0xf]
  %v32 = vld [vmem:[%s1 + $0x4] sm:$0xf]
  %v33 = vld [vmem:[%s1 + $0x8] sm:$0xf]
  %v34 = vld [vmem:[%s1 + $0xc] sm:$0xf]
  %v35 = vld [vmem:[%s1 + $0x10] sm:$0xf]
  %v36 = vld [vmem:[%s1 + $0x14] sm:$0xf]
  %v37 = vld [vmem:[%s1 + $0x18] sm:$0xf]
  %v38 = vld [vmem:[%s1 + $0x1c] sm:$0xf]
  %v39 = vld [vmem:[%s1 + $0x20] sm:$0xf]
  %v40 = vld [vmem:[%s1 + $0x24] sm:$0xf]
  %v41 = vld [vmem:[%s1 + $0x28] sm:$0xf]
  %v42 = vld [vmem:[%s1 + $0x2c] sm:$0xf]
  %v43 = vld [vmem:[%s1 + $0x30] sm:$0xf]
  %v44 = vld [vmem:[%s1 + $0x34] sm:$0xf]
  %v45 = vld [vmem:[%s1 + $0x38] sm:$0xf]
  %v46 = vld [vmem:[%s1 + $0x3c] sm:$0xf]
  %v47 = vld [vmem:[%s1 + $0x40] sm:$0xf]
  %v48 = vld [vmem:[%s1 + $0x44] sm:$0xf]
  %v49 = vld [vmem:[%s1 + $0x48] sm:$0xf]
  %v50 = vld [vmem:[%s1 + $0x4c] sm:$0xf]
  %v51 = vld [vmem:[%s1 + $0x50] sm:$0xf]
  %v52 = vld [vmem:[%s1 + $0x54] sm:$0xf]
  %v53 = vld [vmem:[%s1 + $0x58] sm:$0xf]
  %v54 = vld [vmem:[%s1 + $0x5c] sm:$0xf]
  %v55 = vld [vmem:[%s1 + $0x60] sm:$0xf]
  %v56 = vld [vmem:[%s1 + $0x64] sm:$0xf]
  %v57 = vld [vmem:[%s1 + $0x68] sm:$0xf]
  %v58 = vld [vmem:[%s1 + $0x6c] sm:$0xf]
  %v59 = vld [vmem:[%s1 + $0x70] sm:$0xf]
  %v60 = vld [vmem:[%s1 + $0x74] sm:$0xf]
  %v61 = vld [vmem:[%s1 + $0x78] sm:$0xf]
  %v62 = vld [vmem:[%s1 + $0x7c] sm:$0xf]
  %v63 = vld [vmem:[%s2] sm:$0x1]
  %v65 = vlaneseq
  %v66 = vshrl.u32 %v65, 7
  %v67 = vsub.s32 0, %v66
  %v68 = vrot.slane %v63, %v67
  %v102 = vunpack.c.l.b16 %v31
  %v103 = vunpack.c.l.b16 %v32
  %v104 = vunpack.c.l.b16 %v33
  %v105 = vunpack.c.l.b16 %v34
  %v106 = vunpack.c.l.b16 %v35
  %v107 = vunpack.c.l.b16 %v36
  %v108 = vunpack.c.l.b16 %v37
  %v109 = vunpack.c.l.b16 %v38
  %v110 = vunpack.c.l.b16 %v39
  %v111 = vunpack.c.l.b16 %v40
  %v112 = vunpack.c.l.b16 %v41
  %v113 = vunpack.c.l.b16 %v42
  %v114 = vunpack.c.l.b16 %v43
  %v115 = vunpack.c.l.b16 %v44
  %v116 = vunpack.c.l.b16 %v45
  %v117 = vunpack.c.l.b16 %v46
  %v118 = vunpack.c.l.b16 %v47
  %v119 = vunpack.c.l.b16 %v48
  %v120 = vunpack.c.l.b16 %v49
  %v121 = vunpack.c.l.b16 %v50
  %v122 = vunpack.c.l.b16 %v51
  %v123 = vunpack.c.l.b16 %v52
  %v124 = vunpack.c.l.b16 %v53
  %v125 = vunpack.c.l.b16 %v54
  %v126 = vunpack.c.l.b16 %v55
  %v127 = vunpack.c.l.b16 %v56
  %v128 = vunpack.c.l.b16 %v57
  %v129 = vunpack.c.l.b16 %v58
  %v130 = vunpack.c.l.b16 %v59
  %v131 = vunpack.c.l.b16 %v60
  %v132 = vunpack.c.l.b16 %v61
  %v133 = vunpack.c.l.b16 %v62
  %v134 = vpack.c.b16 %v103, %v102
  %v135 = vpack.c.b16 %v105, %v104
  %v136 = vpack.c.b16 %v107, %v106
  %v137 = vpack.c.b16 %v109, %v108
  %v138 = vpack.c.b16 %v111, %v110
  %v139 = vpack.c.b16 %v113, %v112
  %v140 = vpack.c.b16 %v115, %v114
  %v141 = vpack.c.b16 %v117, %v116
  %v142 = vpack.c.b16 %v119, %v118
  %v143 = vpack.c.b16 %v121, %v120
  %v144 = vpack.c.b16 %v123, %v122
  %v145 = vpack.c.b16 %v125, %v124
  %v146 = vpack.c.b16 %v127, %v126
  %v147 = vpack.c.b16 %v129, %v128
  %v148 = vpack.c.b16 %v131, %v130
  %v149 = vpack.c.b16 %v133, %v132
  %166 = vmatprep.subr.bf16.mxu0 0
  %167 = vmatpush1.bf16.msra.mxu0 %v141
  %168 = vmatprep.subr.bf16.mxu0 0
  %169 = vmatpush1.bf16.msra.mxu0 %v140
  %170 = vmatprep.subr.bf16.mxu0 0
  %171 = vmatpush1.bf16.msra.mxu0 %v139
  %172 = vmatprep.subr.bf16.mxu0 0
  %173 = vmatpush1.bf16.msra.mxu0 %v138
  %174 = vmatprep.subr.bf16.mxu0 0
  %175 = vmatpush1.bf16.msra.mxu0 %v137
  %176 = vmatprep.subr.bf16.mxu0 0
  %177 = vmatpush1.bf16.msra.mxu0 %v136
  %178 = vmatprep.subr.bf16.mxu0 0
  %179 = vmatpush1.bf16.msra.mxu0 %v135
  %180 = vmatprep.subr.bf16.mxu0 0
  %181 = vmatpush1.bf16.msra.mxu0 %v134
  %182 = vmatprep.subr.bf16.mxu0 0
  %183 = vmatpush2.bf16.msra.mxu0 %v149
  %184 = vmatprep.subr.bf16.mxu0 0
  %185 = vmatpush2.bf16.msra.mxu0 %v148
  %186 = vmatprep.subr.bf16.mxu0 0
  %187 = vmatpush2.bf16.msra.mxu0 %v147
  %188 = vmatprep.subr.bf16.mxu0 0
  %189 = vmatpush2.bf16.msra.mxu0 %v146
  %190 = vmatprep.subr.bf16.mxu0 0
  %191 = vmatpush2.bf16.msra.mxu0 %v145
  %192 = vmatprep.subr.bf16.mxu0 0
  %193 = vmatpush2.bf16.msra.mxu0 %v144
  %194 = vmatprep.subr.bf16.mxu0 0
  %195 = vmatpush2.bf16.msra.mxu0 %v143
  %196 = vmatprep.subr.bf16.mxu0 0
  %197 = vmatpush2.bf16.msra.mxu0 %v142
  %198 = vmatprep.mubr.bf16.mxu0 %v30
  %199 = vmatmul.mubr.bf16.gmra.mxu0 %v29
  %v200 = vpop.f32.mrf.mxu0
  %v201 = vadd.f32 %v68, %v200
  %v202 = vpop.f32.mrf.mxu0
  %v203 = vpop.f32.mrf.mxu0
  %v204 = vpop.f32.mrf.mxu0
  %205 = vdwg.mxu0
  %v206 = vld [vmem:[%s3] sm:$0xf]
  %v207 = vld [vmem:[%s3 + $0x4] sm:$0xf]
  %v208 = vld [vmem:[%s3 + $0x8] sm:$0xf]
  %v209 = vld [vmem:[%s3 + $0xc] sm:$0xf]
  %v210 = vld [vmem:[%s3 + $0x10] sm:$0xf]
  %v211 = vld [vmem:[%s3 + $0x14] sm:$0xf]
  %v212 = vld [vmem:[%s3 + $0x18] sm:$0xf]
  %v213 = vld [vmem:[%s3 + $0x1c] sm:$0xf]
  %v214 = vld [vmem:[%s3 + $0x20] sm:$0xf]
  %v215 = vld [vmem:[%s3 + $0x24] sm:$0xf]
  %v216 = vld [vmem:[%s3 + $0x28] sm:$0xf]
  %v217 = vld [vmem:[%s3 + $0x2c] sm:$0xf]
  %v218 = vld [vmem:[%s3 + $0x30] sm:$0xf]
  %v219 = vld [vmem:[%s3 + $0x34] sm:$0xf]
  %v220 = vld [vmem:[%s3 + $0x38] sm:$0xf]
  %v221 = vld [vmem:[%s3 + $0x3c] sm:$0xf]
  %v222 = vld [vmem:[%s3 + $0x40] sm:$0xf]
  %v223 = vld [vmem:[%s3 + $0x44] sm:$0xf]
  %v224 = vld [vmem:[%s3 + $0x48] sm:$0xf]
  %v225 = vld [vmem:[%s3 + $0x4c] sm:$0xf]
  %v226 = vld [vmem:[%s3 + $0x50] sm:$0xf]
  %v227 = vld [vmem:[%s3 + $0x54] sm:$0xf]
  %v228 = vld [vmem:[%s3 + $0x58] sm:$0xf]
  %v229 = vld [vmem:[%s3 + $0x5c] sm:$0xf]
  %v230 = vld [vmem:[%s3 + $0x60] sm:$0xf]
  %v231 = vld [vmem:[%s3 + $0x64] sm:$0xf]
  %v232 = vld [vmem:[%s3 + $0x68] sm:$0xf]
  %v233 = vld [vmem:[%s3 + $0x6c] sm:$0xf]
  %v234 = vld [vmem:[%s3 + $0x70] sm:$0xf]
  %v235 = vld [vmem:[%s3 + $0x74] sm:$0xf]
  %v236 = vld [vmem:[%s3 + $0x78] sm:$0xf]
  %v237 = vld [vmem:[%s3 + $0x7c] sm:$0xf]
  %v238 = vld [vmem:[%s4] sm:$0x1]
  %v240 = vlaneseq
  %v241 = vshrl.u32 %v240, 7
  %v242 = vsub.s32 0, %v241
  %v243 = vrot.slane %v238, %v242
  %v277 = vunpack.c.l.b16 %v206
  %v278 = vunpack.c.l.b16 %v207
  %v279 = vunpack.c.l.b16 %v208
  %v280 = vunpack.c.l.b16 %v209
  %v281 = vunpack.c.l.b16 %v210
  %v282 = vunpack.c.l.b16 %v211
  %v283 = vunpack.c.l.b16 %v212
  %v284 = vunpack.c.l.b16 %v213
  %v285 = vunpack.c.l.b16 %v214
  %v286 = vunpack.c.l.b16 %v215
  %v287 = vunpack.c.l.b16 %v216
  %v288 = vunpack.c.l.b16 %v217
  %v289 = vunpack.c.l.b16 %v218
  %v290 = vunpack.c.l.b16 %v219
  %v291 = vunpack.c.l.b16 %v220
  %v292 = vunpack.c.l.b16 %v221
  %v293 = vunpack.c.l.b16 %v222
  %v294 = vunpack.c.l.b16 %v223
  %v295 = vunpack.c.l.b16 %v224
  %v296 = vunpack.c.l.b16 %v225
  %v297 = vunpack.c.l.b16 %v226
  %v298 = vunpack.c.l.b16 %v227
  %v299 = vunpack.c.l.b16 %v228
  %v300 = vunpack.c.l.b16 %v229
  %v301 = vunpack.c.l.b16 %v230
  %v302 = vunpack.c.l.b16 %v231
  %v303 = vunpack.c.l.b16 %v232
  %v304 = vunpack.c.l.b16 %v233
  %v305 = vunpack.c.l.b16 %v234
  %v306 = vunpack.c.l.b16 %v235
  %v307 = vunpack.c.l.b16 %v236
  %v308 = vunpack.c.l.b16 %v237
  %v309 = vpack.c.b16 %v278, %v277
  %v310 = vpack.c.b16 %v280, %v279
  %v311 = vpack.c.b16 %v282, %v281
  %v312 = vpack.c.b16 %v284, %v283
  %v313 = vpack.c.b16 %v286, %v285
  %v314 = vpack.c.b16 %v288, %v287
  %v315 = vpack.c.b16 %v290, %v289
  %v316 = vpack.c.b16 %v292, %v291
  %v317 = vpack.c.b16 %v294, %v293
  %v318 = vpack.c.b16 %v296, %v295
  %v319 = vpack.c.b16 %v298, %v297
  %v320 = vpack.c.b16 %v300, %v299
  %v321 = vpack.c.b16 %v302, %v301
  %v322 = vpack.c.b16 %v304, %v303
  %v323 = vpack.c.b16 %v306, %v305
  %v324 = vpack.c.b16 %v308, %v307
  %341 = vmatprep.subr.bf16.mxu0 0
  %342 = vmatpush1.bf16.msra.mxu0 %v316
  %343 = vmatprep.subr.bf16.mxu0 0
  %344 = vmatpush1.bf16.msra.mxu0 %v315
  %345 = vmatprep.subr.bf16.mxu0 0
  %346 = vmatpush1.bf16.msra.mxu0 %v314
  %347 = vmatprep.subr.bf16.mxu0 0
  %348 = vmatpush1.bf16.msra.mxu0 %v313
  %349 = vmatprep.subr.bf16.mxu0 0
  %350 = vmatpush1.bf16.msra.mxu0 %v312
  %351 = vmatprep.subr.bf16.mxu0 0
  %352 = vmatpush1.bf16.msra.mxu0 %v311
  %353 = vmatprep.subr.bf16.mxu0 0
  %354 = vmatpush1.bf16.msra.mxu0 %v310
  %355 = vmatprep.subr.bf16.mxu0 0
  %356 = vmatpush1.bf16.msra.mxu0 %v309
  %357 = vmatprep.subr.bf16.mxu0 0
  %358 = vmatpush2.bf16.msra.mxu0 %v324
  %359 = vmatprep.subr.bf16.mxu0 0
  %360 = vmatpush2.bf16.msra.mxu0 %v323
  %361 = vmatprep.subr.bf16.mxu0 0
  %362 = vmatpush2.bf16.msra.mxu0 %v322
  %363 = vmatprep.subr.bf16.mxu0 0
  %364 = vmatpush2.bf16.msra.mxu0 %v321
  %365 = vmatprep.subr.bf16.mxu0 0
  %366 = vmatpush2.bf16.msra.mxu0 %v320
  %367 = vmatprep.subr.bf16.mxu0 0
  %368 = vmatpush2.bf16.msra.mxu0 %v319
  %369 = vmatprep.subr.bf16.mxu0 0
  %370 = vmatpush2.bf16.msra.mxu0 %v318
  %371 = vmatprep.subr.bf16.mxu0 0
  %372 = vmatpush2.bf16.msra.mxu0 %v317
  %373 = vmatprep.mubr.bf16.mxu0 %v30
  %374 = vmatmul.mubr.bf16.gmra.mxu0 %v29
  %v375 = vpop.f32.mrf.mxu0
  %v376 = vadd.f32 %v243, %v375
  %v377 = vpop.f32.mrf.mxu0
  %v378 = vpop.f32.mrf.mxu0
  %v379 = vpop.f32.mrf.mxu0
  %380 = vdwg.mxu0
  %v381 = vmul.f32 %v376, 0.5
  %v382 = vmul.f32 %v381, 1.442695
  %v383 = vpow.pop %v382
  %v384 = vld [vmem:[%s5] sm:$0xff]
  %v385 = vmul.f32 %v384, %v383
  %v386 = vadd.f32 %v385, %v201
  %v387 = vpack.c.bf16 %v386, %v386
  %v388 = vld [vmem:[%s6] sm:$0xff]
  %v389 = vld [vmem:[%s6 + $0x8] sm:$0xff]
  %v390 = vld [vmem:[%s6 + $0x10] sm:$0xff]
  %v391 = vld [vmem:[%s6 + $0x18] sm:$0xff]
  %v392 = vld [vmem:[%s6 + $0x20] sm:$0xff]
  %v393 = vld [vmem:[%s6 + $0x28] sm:$0xff]
  %v394 = vld [vmem:[%s6 + $0x30] sm:$0xff]
  %v395 = vld [vmem:[%s6 + $0x38] sm:$0xff]
  %v404 = vunpack.c.l.b16 %v388
  %v405 = vunpack.c.h.b16 %v388
  %v406 = vunpack.c.l.b16 %v389
  %v407 = vunpack.c.h.b16 %v389
  %v408 = vunpack.c.l.b16 %v390
  %v409 = vunpack.c.h.b16 %v390
  %v410 = vunpack.c.l.b16 %v391
  %v411 = vunpack.c.h.b16 %v391
  %v412 = vunpack.c.l.b16 %v392
  %v413 = vunpack.c.h.b16 %v392
  %v414 = vunpack.c.l.b16 %v393
  %v415 = vunpack.c.h.b16 %v393
  %v416 = vunpack.c.l.b16 %v394
  %v417 = vunpack.c.h.b16 %v394
  %v418 = vunpack.c.l.b16 %v395
  %v419 = vunpack.c.h.b16 %v395
  %v420 = vpack.c.b16 %v408, %v404
  %v421 = vpack.c.b16 %v409, %v405
  %v422 = vpack.c.b16 %v410, %v406
  %v423 = vpack.c.b16 %v411, %v407
  %v424 = vpack.c.b16 %v416, %v412
  %v425 = vpack.c.b16 %v417, %v413
  %v426 = vpack.c.b16 %v418, %v414
  %v427 = vpack.c.b16 %v419, %v415
  %vm436 = vcmask 261120
  %v438 = vsel %vm436, %v387, 0
  %440 = vmatprep.subr.bf16.mxu0 0
  %441 = vmatpush1.bf16.msra.mxu0 0
  %442 = vmatprep.subr.bf16.mxu0 0
  %443 = vmatpush1.bf16.msra.mxu0 0
  %444 = vmatprep.subr.bf16.mxu0 0
  %445 = vmatpush1.bf16.msra.mxu0 0
  %446 = vmatprep.subr.bf16.mxu0 0
  %447 = vmatpush1.bf16.msra.mxu0 0
  %448 = vmatprep.subr.bf16.mxu0 0
  %449 = vmatpush1.bf16.msra.mxu0 0
  %450 = vmatprep.subr.bf16.mxu0 0
  %451 = vmatpush1.bf16.msra.mxu0 0
  %452 = vmatprep.subr.bf16.mxu0 %v425
  %453 = vmatpush1.bf16.msra.mxu0 %v424
  %454 = vmatprep.subr.bf16.mxu0 %v421
  %455 = vmatpush1.bf16.msra.mxu0 %v420
  %456 = vmatprep.subr.bf16.mxu0 0
  %457 = vmatpush2.bf16.msra.mxu0 0
  %458 = vmatprep.subr.bf16.mxu0 0
  %459 = vmatpush2.bf16.msra.mxu0 0
  %460 = vmatprep.subr.bf16.mxu0 0
  %461 = vmatpush2.bf16.msra.mxu0 0
  %462 = vmatprep.subr.bf16.mxu0 0
  %463 = vmatpush2.bf16.msra.mxu0 0
  %464 = vmatprep.subr.bf16.mxu0 0
  %465 = vmatpush2.bf16.msra.mxu0 0
  %466 = vmatprep.subr.bf16.mxu0 0
  %467 = vmatpush2.bf16.msra.mxu0 0
  %468 = vmatprep.subr.bf16.mxu0 0
  %469 = vmatpush2.bf16.msra.mxu0 0
  %470 = vmatprep.subr.bf16.mxu0 0
  %471 = vmatpush2.bf16.msra.mxu0 0
  %472 = vmatprep.mubr.bf16.mxu0 0
  %473 = vmatmul.mubr.bf16.gmra.mxu0 %v438
  %v474 = vpop.f32.mrf.mxu0
  %v475 = vadd.f32 0.0, %v474
  %v476 = vpop.f32.mrf.mxu0
  %v477 = vadd.f32 0.0, %v476
  %v478 = vpop.f32.mrf.mxu0
  %v479 = vpop.f32.mrf.mxu0
  %480 = vdwg.mxu0
  %481 = vmatprep.subr.bf16.mxu0 0
  %482 = vmatpush1.bf16.msra.mxu0 0
  %483 = vmatprep.subr.bf16.mxu0 0
  %484 = vmatpush1.bf16.msra.mxu0 0
  %485 = vmatprep.subr.bf16.mxu0 0
  %486 = vmatpush1.bf16.msra.mxu0 0
  %487 = vmatprep.subr.bf16.mxu0 0
  %488 = vmatpush1.bf16.msra.mxu0 0
  %489 = vmatprep.subr.bf16.mxu0 0
  %490 = vmatpush1.bf16.msra.mxu0 0
  %491 = vmatprep.subr.bf16.mxu0 0
  %492 = vmatpush1.bf16.msra.mxu0 0
  %493 = vmatprep.subr.bf16.mxu0 %v427
  %494 = vmatpush1.bf16.msra.mxu0 %v426
  %495 = vmatprep.subr.bf16.mxu0 %v423
  %496 = vmatpush1.bf16.msra.mxu0 %v422
  %497 = vmatprep.subr.bf16.mxu0 0
  %498 = vmatpush2.bf16.msra.mxu0 0
  %499 = vmatprep.subr.bf16.mxu0 0
  %500 = vmatpush2.bf16.msra.mxu0 0
  %501 = vmatprep.subr.bf16.mxu0 0
  %502 = vmatpush2.bf16.msra.mxu0 0
  %503 = vmatprep.subr.bf16.mxu0 0
  %504 = vmatpush2.bf16.msra.mxu0 0
  %505 = vmatprep.subr.bf16.mxu0 0
  %506 = vmatpush2.bf16.msra.mxu0 0
  %507 = vmatprep.subr.bf16.mxu0 0
  %508 = vmatpush2.bf16.msra.mxu0 0
  %509 = vmatprep.subr.bf16.mxu0 0
  %510 = vmatpush2.bf16.msra.mxu0 0
  %511 = vmatprep.subr.bf16.mxu0 0
  %512 = vmatpush2.bf16.msra.mxu0 0
  %513 = vmatprep.mubr.bf16.mxu0 0
  %514 = vmatmul.mubr.bf16.gmra.mxu0 %v438
  %v515 = vpop.f32.mrf.mxu0
  %v516 = vadd.f32 0.0, %v515
  %v517 = vpop.f32.mrf.mxu0
  %v518 = vadd.f32 0.0, %v517
  %v519 = vpop.f32.mrf.mxu0
  %v520 = vpop.f32.mrf.mxu0
  %521 = vdwg.mxu0
  %522 = vst [vmem:[%s7] sm:$0xff] %v475
  %523 = vst [vmem:[%s7 + $0x8] sm:$0xff] %v477
  %524 = vst [vmem:[%s7 + $0x10] sm:$0xff] %v516
  %525 = vst [vmem:[%s7 + $0x18] sm:$0xff] %v518
  // Predicated region
  $region30: #{fwd.9} parent=0 // pred_check
    _
  $region31: #{fwd.9} parent=0 // pred_check_branch
    %527 = sbr.rel (0) target = $region33
  $region32: #{fwd.9} parent=0 // pred_region
    _
  $region33: #{fwd.9} parent=0 // pred_fallthru
    _
  // Predicated region
  $region34: #{fwd.9} parent=0 // pred_check
    _
  $region35: #{fwd.9} parent=0 // pred_check_branch
    %529 = sbr.rel (0) target = $region37
  $region36: #{fwd.9} parent=0 // pred_region
    _
  $region37: #{fwd.9} parent=0 // pred_fallthru
    _

// kernel: fwd.11
$region0: #{fwd.11}
  #allocation0 [shape = 'u32[]', space=smem, size = 0x4, offset = 0x4, fixed_abs, tag = 'smem constant byte address 0x4 - core index']
  #allocation1 [shape = 'u32[144,128]{1,0:T(1,128)}', space=vmem, size = 0x12000, scoped, tag = 'internal scratch']
  %s0 = inlined_call_operand.vmem [shape: bf16[64,128], index: 0, kind: input, shape index: {}]
  %s1 = inlined_call_operand.vmem [shape: bf16[128,256], index: 1, kind: input, shape index: {}]
  %s2 = inlined_call_operand.vmem [shape: f32[1,256], index: 2, kind: input, shape index: {}]
  %s3 = inlined_call_operand.hbm [shape: f32[64,256], index: 3, kind: output, shape index: {}]
  %s4 = sld [smem:[#allocation0]]
  $region22: #{fwd.11} parent=0
    _
  %s6 = ssub.s32 1, %s4
  %s7 = scalar_select 0, %s6, %s4
  $region1: #{fwd.11} parent=0
    #allocation2 [shape = 'u8[65536]{0}', space=vmem, size = 0x10000, scoped, tag = 'output window, operand 0, single buffered']
    #allocation3 [shape = 's32[1]{0}', space=sflag, size = 0x4, scoped, tag = 'scoped memory for fwd.11']
    %8 = vsyncpa [#allocation3], 0
    // Predicated region
    $region2: #{fwd.11} parent=1 // pred_check
      _
    $region3: #{fwd.11} parent=1 // pred_check_branch
      %10 = sbr.rel (0) target = $region5
    $region4: #{fwd.11} parent=1 // pred_region
      _
    $region5: #{fwd.11} parent=1 // pred_fallthru
      _
    // Predicated region
    $region6: #{fwd.11} parent=1 // pred_check
      _
    $region7: #{fwd.11} parent=1 // pred_check_branch
      %12 = sbr.rel (0) target = $region9
    $region8: #{fwd.11} parent=1 // pred_region
      _
    $region9: #{fwd.11} parent=1 // pred_fallthru
      _
    // Predicated region
    $region10: #{fwd.11} parent=1 // pred_check
      _
    $region11: #{fwd.11} parent=1 // pred_check_branch
      %14 = sbr.rel (0) target = $region13
    $region12: #{fwd.11} parent=1 // pred_region
      _
    $region13: #{fwd.11} parent=1 // pred_fallthru
      _
    %v16 = vld [vmem:[%s0] sm:$0xf]
    %v17 = vld [vmem:[%s0 + $0x4] sm:$0xf]
    %v18 = vld [vmem:[%s0 + $0x8] sm:$0xf]
    %v19 = vld [vmem:[%s0 + $0xc] sm:$0xf]
    %v20 = vld [vmem:[%s0 + $0x10] sm:$0xf]
    %v21 = vld [vmem:[%s0 + $0x14] sm:$0xf]
    %v22 = vld [vmem:[%s0 + $0x18] sm:$0xf]
    %v23 = vld [vmem:[%s0 + $0x1c] sm:$0xf]
    %v24 = vld [vmem:[%s1] sm:$0xff]
    %v25 = vld [vmem:[%s1 + $0x8] sm:$0xff]
    %v26 = vld [vmem:[%s1 + $0x10] sm:$0xff]
    %v27 = vld [vmem:[%s1 + $0x18] sm:$0xff]
    %v28 = vld [vmem:[%s1 + $0x20] sm:$0xff]
    %v29 = vld [vmem:[%s1 + $0x28] sm:$0xff]
    %v30 = vld [vmem:[%s1 + $0x30] sm:$0xff]
    %v31 = vld [vmem:[%s1 + $0x38] sm:$0xff]
    %v32 = vld [vmem:[%s1 + $0x40] sm:$0xff]
    %v33 = vld [vmem:[%s1 + $0x48] sm:$0xff]
    %v34 = vld [vmem:[%s1 + $0x50] sm:$0xff]
    %v35 = vld [vmem:[%s1 + $0x58] sm:$0xff]
    %v36 = vld [vmem:[%s1 + $0x60] sm:$0xff]
    %v37 = vld [vmem:[%s1 + $0x68] sm:$0xff]
    %v38 = vld [vmem:[%s1 + $0x70] sm:$0xff]
    %v39 = vld [vmem:[%s1 + $0x78] sm:$0xff]
    %v40 = vld [vmem:[%s2] sm:$0x3]
    %v42 = vlaneseq
    %v43 = vshrl.u32 %v42, 7
    %v44 = vsub.s32 0, %v43
    %v45 = vrot.slane %v40, %v44
    %v46 = vlaneseq
    %v47 = vshrl.u32 %v46, 7
    %v48 = vsub.s32 1, %v47
    %v49 = vrot.slane %v40, %v48
    %v60 = vunpack.c.l.b16 %v16
    %v61 = vunpack.c.l.b16 %v17
    %v62 = vunpack.c.l.b16 %v18
    %v63 = vunpack.c.l.b16 %v19
    %v64 = vunpack.c.l.b16 %v20
    %v65 = vunpack.c.l.b16 %v21
    %v66 = vunpack.c.l.b16 %v22
    %v67 = vunpack.c.l.b16 %v23
    %v68 = vpack.c.b16 %v61, %v60
    %v69 = vpack.c.b16 %v63, %v62
    %v70 = vpack.c.b16 %v65, %v64
    %v71 = vpack.c.b16 %v67, %v66
    %v92 = vunpack.c.l.b16 %v24
    %v93 = vunpack.c.h.b16 %v24
    %v94 = vunpack.c.l.b16 %v25
    %v95 = vunpack.c.h.b16 %v25
    %v96 = vunpack.c.l.b16 %v26
    %v97 = vunpack.c.h.b16 %v26
    %v98 = vunpack.c.l.b16 %v27
    %v99 = vunpack.c.h.b16 %v27
    %v100 = vunpack.c.l.b16 %v28
    %v101 = vunpack.c.h.b16 %v28
    %v102 = vunpack.c.l.b16 %v29
    %v103 = vunpack.c.h.b16 %v29
    %v104 = vunpack.c.l.b16 %v30
    %v105 = vunpack.c.h.b16 %v30
    %v106 = vunpack.c.l.b16 %v31
    %v107 = vunpack.c.h.b16 %v31
    %v108 = vunpack.c.l.b16 %v32
    %v109 = vunpack.c.h.b16 %v32
    %v110 = vunpack.c.l.b16 %v33
    %v111 = vunpack.c.h.b16 %v33
    %v112 = vunpack.c.l.b16 %v34
    %v113 = vunpack.c.h.b16 %v34
    %v114 = vunpack.c.l.b16 %v35
    %v115 = vunpack.c.h.b16 %v35
    %v116 = vunpack.c.l.b16 %v36
    %v117 = vunpack.c.h.b16 %v36
    %v118 = vunpack.c.l.b16 %v37
    %v119 = vunpack.c.h.b16 %v37
    %v120 = vunpack.c.l.b16 %v38
    %v121 = vunpack.c.h.b16 %v38
    %v122 = vunpack.c.l.b16 %v39
    %v123 = vunpack.c.h.b16 %v39
    %v124 = vpack.c.b16 %v94, %v92
    %v125 = vpack.c.b16 %v95, %v93
    %v126 = vpack.c.b16 %v98, %v96
    %v127 = vpack.c.b16 %v99, %v97
    %v128 = vpack.c.b16 %v102, %v100
    %v129 = vpack.c.b16 %v103, %v101
    %v130 = vpack.c.b16 %v106, %v104
    %v131 = vpack.c.b16 %v107, %v105
    %v132 = vpack.c.b16 %v110, %v108
    %v133 = vpack.c.b16 %v111, %v109
    %v134 = vpack.c.b16 %v114, %v112
    %v135 = vpack.c.b16 %v115, %v113
    %v136 = vpack.c.b16 %v118, %v116
    %v137 = vpack.c.b16 %v119, %v117
    %v138 = vpack.c.b16 %v122, %v120
    %v139 = vpack.c.b16 %v123, %v121
    %156 = vmatprep.subr.bf16.mxu0 %v139
    %157 = vmatpush1.bf16.msra.mxu0 %v138
    %158 = vmatprep.subr.bf16.mxu0 %v137
    %159 = vmatpush1.bf16.msra.mxu0 %v136
    %160 = vmatprep.subr.bf16.mxu0 %v135
    %161 = vmatpush1.bf16.msra.mxu0 %v134
    %162 = vmatprep.subr.bf16.mxu0 %v133
    %163 = vmatpush1.bf16.msra.mxu0 %v132
    %164 = vmatprep.subr.bf16.mxu0 %v131
    %165 = vmatpush1.bf16.msra.mxu0 %v130
    %166 = vmatprep.subr.bf16.mxu0 %v129
    %167 = vmatpush1.bf16.msra.mxu0 %v128
    %168 = vmatprep.subr.bf16.mxu0 %v127
    %169 = vmatpush1.bf16.msra.mxu0 %v126
    %170 = vmatprep.subr.bf16.mxu0 %v125
    %171 = vmatpush1.bf16.msra.mxu0 %v124
    %172 = vmatprep.subr.bf16.mxu0 0
    %173 = vmatpush2.bf16.msra.mxu0 0
    %174 = vmatprep.subr.bf16.mxu0 0
    %175 = vmatpush2.bf16.msra.mxu0 0
    %176 = vmatprep.subr.bf16.mxu0 0
    %177 = vmatpush2.bf16.msra.mxu0 0
    %178 = vmatprep.subr.bf16.mxu0 0
    %179 = vmatpush2.bf16.msra.mxu0 0
    %180 = vmatprep.subr.bf16.mxu0 0
    %181 = vmatpush2.bf16.msra.mxu0 0
    %182 = vmatprep.subr.bf16.mxu0 0
    %183 = vmatpush2.bf16.msra.mxu0 0
    %184 = vmatprep.subr.bf16.mxu0 0
    %185 = vmatpush2.bf16.msra.mxu0 0
    %186 = vmatprep.subr.bf16.mxu0 0
    %187 = vmatpush2.bf16.msra.mxu0 0
    %188 = vmatprep.mubr.bf16.mxu0 0
    %189 = vmatmul.mubr.bf16.gmra.mxu0 %v68
    %v190 = vpop.f32.mrf.mxu0
    %v191 = vadd.f32 %v45, %v190
    %v192 = vpop.f32.mrf.mxu0
    %v193 = vadd.f32 %v49, %v192
    %v194 = vpop.f32.mrf.mxu0
    %v195 = vadd.f32 %v45, %v194
    %v196 = vpop.f32.mrf.mxu0
    %v197 = vadd.f32 %v49, %v196
    %198 = vmatprep.mubr.bf16.mxu0 0
    %199 = vmatmul.mubr.bf16.gmra.mxu0 %v69
    %v200 = vpop.f32.mrf.mxu0
    %v201 = vadd.f32 %v45, %v200
    %v202 = vpop.f32.mrf.mxu0
    %v203 = vadd.f32 %v49, %v202
    %v204 = vpop.f32.mrf.mxu0
    %v205 = vadd.f32 %v45, %v204
    %v206 = vpop.f32.mrf.mxu0
    %v207 = vadd.f32 %v49, %v206
    %208 = vmatprep.mubr.bf16.mxu0 0
    %209 = vmatmul.mubr.bf16.gmra.mxu0 %v70
    %v210 = vpop.f32.mrf.mxu0
    %v211 = vadd.f32 %v45, %v210
    %v212 = vpop.f32.mrf.mxu0
    %v213 = vadd.f32 %v49, %v212
    %v214 = vpop.f32.mrf.mxu0
    %v215 = vadd.f32 %v45, %v214
    %v216 = vpop.f32.mrf.mxu0
    %v217 = vadd.f32 %v49, %v216
    %218 = vmatprep.mubr.bf16.mxu0 0
    %219 = vmatmul.mubr.bf16.gmra.mxu0 %v71
    %v220 = vpop.f32.mrf.mxu0
    %v221 = vadd.f32 %v45, %v220
    %v222 = vpop.f32.mrf.mxu0
    %v223 = vadd.f32 %v49, %v222
    %v224 = vpop.f32.mrf.mxu0
    %v225 = vadd.f32 %v45, %v224
    %v226 = vpop.f32.mrf.mxu0
    %v227 = vadd.f32 %v49, %v226
    %228 = vdwg.mxu0
    %229 = vst [vmem:[#allocation2] sm:$0xff] %v191
    %230 = vst [vmem:[#allocation2 + $0x8] sm:$0xff] %v193
    %231 = vst [vmem:[#allocation2 + $0x10] sm:$0xff] %v195
    %232 = vst [vmem:[#allocation2 + $0x18] sm:$0xff] %v197
    %233 = vst [vmem:[#allocation2 + $0x20] sm:$0xff] %v201
    %234 = vst [vmem:[#allocation2 + $0x28] sm:$0xff] %v203
    %235 = vst [vmem:[#allocation2 + $0x30] sm:$0xff] %v205
    %236 = vst [vmem:[#allocation2 + $0x38] sm:$0xff] %v207
    %237 = vst [vmem:[#allocation2 + $0x40] sm:$0xff] %v211
    %238 = vst [vmem:[#allocation2 + $0x48] sm:$0xff] %v213
    %239 = vst [vmem:[#allocation2 + $0x50] sm:$0xff] %v215
    %240 = vst [vmem:[#allocation2 + $0x58] sm:$0xff] %v217
    %241 = vst [vmem:[#allocation2 + $0x60] sm:$0xff] %v221
    %242 = vst [vmem:[#allocation2 + $0x68] sm:$0xff] %v223
    %243 = vst [vmem:[#allocation2 + $0x70] sm:$0xff] %v225
    %244 = vst [vmem:[#allocation2 + $0x78] sm:$0xff] %v227
    // Predicated region
    $region14: #{fwd.11} parent=1 // pred_check
      _
    $region15: #{fwd.11} parent=1 // pred_check_branch
      %246 = sbr.rel (0) target = $region17
    $region16: #{fwd.11} parent=1 // pred_region
      %s248 = ssub.s32 2048, 2048
      %249 = vsyncadd [#allocation3], %s248
      %s250 = sshll.u32 [#allocation2], 4
      %s251 = int_to_ptr.vmem [resolvable:$true] %s250
      %256 = dma.vmem_to_hbm [thread:$0]  %s251, 2048, %s3, [#allocation3], 256, 256, 16
    $region17: #{fwd.11} parent=1 // pred_fallthru
      _
    // Predicated region
    $region18: #{fwd.11} parent=1 // pred_check
      _
    $region19: #{fwd.11} parent=1 // pred_check_branch
      %258 = sbr.rel (0) target = $region21
    $region20: #{fwd.11} parent=1 // pred_region
      %259 = dma.done [#allocation3], 2048
    $region21: #{fwd.11} parent=1 // pred_fallthru
      _
    %260 = vsyncpa [#allocation3], 1

</llo_original>
